<compile_context>
chip_gen: v7x
topology: tpu7x:2x2x1
jax: 0.10.0
libtpu: 0.0.40
codegen_flags: <defaults>
</compile_context>

<pallas_src>
import numpy as np
import jax
import jax.numpy as jnp
from jax.experimental import pallas as pl
from jax.experimental.pallas import tpu as pltpu

LANE = 128


# -------------------------- host-side helpers --------------------------------

def _ceil_to(n, m):
    return ((n + m - 1) // m) * m


def conv_out_size(L, k, stride, pad):
    return (L - k + 2 * pad) // stride + 1


def toeplitz_conv_weight(wconv, L, k, pad, stride=1):
    """Dense Toeplitz matrix (L, C*L_out) for Conv1d(in=1,out=C,stride=1,pad).

    Columns are ordered channel-major (c*L_out + l) to reproduce torch's
    nn.Flatten of the NCL conv activation.  Rows corresponding to zero padding
    are dropped (their input is identically zero)."""
    assert stride == 1, "Toeplitz layout assumes stride == 1"
    w_np = np.asarray(wconv, dtype=np.float32)           # (C, K)
    C, K = w_np.shape
    L_pad = L + 2 * pad
    L_out = L_pad - K + 1
    W_full = np.zeros((L_pad, C * L_out), dtype=np.float32)
    for c in range(C):
        for l in range(L_out):
            W_full[l:l + K, c * L_out + l] = w_np[c]
    return W_full[pad:pad + L, :]                         # (L, C*L_out)


def build_kernel_params(ref_params, names, conv_stride, conv_padding,
                        weights_dtype=jnp.float32):
    """Pack torch-style parameters into the kernel's 10 weight buffers."""
    assert conv_stride == 1
    params = {}
    lay = {"bias_off": {}, "hidden": []}
    bias_segs = []

    for tag, name in zip(("s", "m", "l"), names):
        p = ref_params[name]
        L, k, pad = p["L"], p["k"], p["pad"]
        wconv = np.asarray(p["wconv"], np.float32)        # (C, K)
        bconv = np.asarray(p["bconv"], np.float32)        # (C,)
        C = wconv.shape[0]
        L_out = conv_out_size(L, k, conv_stride, pad)
        flat = C * L_out
        flat_pad = _ceil_to(flat, LANE)                   # lane-dense conv width

        wt = toeplitz_conv_weight(wconv, L, k, pad, conv_stride)   # (L, flat)
        wt_pad = np.zeros((L, flat_pad), np.float32)
        wt_pad[:, :flat] = wt

        bc = np.zeros((flat_pad,), np.float32)
        bc[:flat] = np.repeat(bconv, L_out)               # channel-major bias

        w1_torch = np.asarray(p["w1_torch"], np.float32)  # (H, flat)
        H = w1_torch.shape[0]
        w1t = np.zeros((flat_pad, H), np.float32)
        w1t[:flat, :] = w1_torch.T

        params[f"wt_{tag}"] = jnp.asarray(wt_pad, weights_dtype)
        params[f"w1_{tag}"] = jnp.asarray(w1t, weights_dtype)
        bias_segs.append((f"bc_{tag}", bc))
        bias_segs.append((f"b1_{tag}", np.asarray(p["b1"], np.float32)))
        lay["hidden"].append(H)

    ws1, bs1, ws2, bs2, ws3, bs3, ws4, bs4 = [np.asarray(a, np.float32)
                                              for a in ref_params["shared"]]
    params["ws1"] = jnp.asarray(ws1, weights_dtype)       # (96, 192)
    params["ws2"] = jnp.asarray(ws2, weights_dtype)       # (192, 48)
    bias_segs += [("bs1", bs1), ("bs2", bs2), ("bs3", bs3), ("bs4", bs4)]

    # ---- pack all biases into one (1, total) f32 row, 128-lane aligned ------
    parts, cur = [], 0
    for seg_name, vec in bias_segs:
        v = np.asarray(vec, np.float32).reshape(-1)
        lay["bias_off"][seg_name] = (cur, int(v.size))
        width = _ceil_to(max(int(v.size), 1), LANE)
        buf = np.zeros(width, np.float32)
        buf[:v.size] = v
        parts.append(buf)
        cur += width
    params["bias_pack"] = jnp.asarray(np.concatenate(parts)[None, :])  # (1, total)

    # ---- pack the two small shared weights into one (rows, 128) buffer ------
    r3, c3 = ws3.shape
    r4, c4 = ws4.shape
    rows = _ceil_to(r3 + r4, 8)
    smallw = np.zeros((rows, LANE), np.float32)
    smallw[:r3, :c3] = ws3
    smallw[r3:r3 + r4, :c4] = ws4
    params["smallw_pack"] = jnp.asarray(smallw)
    lay["ws3_shape"] = (r3, c3)
    lay["ws4_shape"] = (r4, c4)
    lay["out_dim"] = c4
    params["layout"] = lay
    return params


# -------------------------- fused Pallas kernel ------------------------------

def _make_kernel(lay):
    HS, HM, HL = lay["hidden"]
    r3, c3 = lay["ws3_shape"]
    r4, c4 = lay["ws4_shape"]
    bias_off = lay["bias_off"]

    def kernel(swir_ref, mwir_ref, lwir_ref,
               wt_s_ref, wt_m_ref, wt_l_ref,
               w1_s_ref, w1_m_ref, w1_l_ref,
               ws1_ref, ws2_ref,
               bias_ref, smallw_ref,
               out_ref):
        def seg(name):
            off, n = bias_off[name]
            return bias_ref[:, off:off + n]               # static zero-cost slice

        def head(x_ref, wt_ref, w1_ref, bc_name, b1_name):
            # Conv1d as a lane-dense Toeplitz matmul, bias, ReLU, then the head
            # Linear (flat -> H), bias, ReLU.  No reshapes / no concat.
            wt = wt_ref[...]
            conv = jnp.dot(x_ref[...].astype(wt.dtype), wt,
                           preferred_element_type=jnp.float32) + seg(bc_name)
            conv = jnp.maximum(conv, 0.0)
            w1 = w1_ref[...]
            h = jnp.dot(conv.astype(w1.dtype), w1,
                        preferred_element_type=jnp.float32) + seg(b1_name)
            return jnp.maximum(h, 0.0)

        h_s = head(swir_ref, wt_s_ref, w1_s_ref, "bc_s", "b1_s")
        h_m = head(mwir_ref, wt_m_ref, w1_m_ref, "bc_m", "b1_m")
        h_l = head(lwir_ref, wt_l_ref, w1_l_ref, "bc_l", "b1_l")

        # Shared layer 1 (96 -> 192): concat(h_s,h_m,h_l) @ W1 as an explicit
        # accumulate chain over row-slices of W1 (MRB-friendly on v7x).
        w1a = ws1_ref[0:HS, :]
        w1b = ws1_ref[HS:HS + HM, :]
        w1c = ws1_ref[HS + HM:HS + HM + HL, :]
        acc = jnp.dot(h_s.astype(w1a.dtype), w1a, preferred_element_type=jnp.float32)
        acc = acc + jnp.dot(h_m.astype(w1b.dtype), w1b, preferred_element_type=jnp.float32)
        acc = acc + jnp.dot(h_l.astype(w1c.dtype), w1c, preferred_element_type=jnp.float32)
        acc = acc + seg("bs1")
        h = jnp.maximum(acc, 0.0)

        ws2 = ws2_ref[...]
        h = jnp.maximum(jnp.dot(h.astype(ws2.dtype), ws2,
                                preferred_element_type=jnp.float32) + seg("bs2"), 0.0)

        ws3 = smallw_ref[0:r3, 0:c3]                       # (48, 16), f32
        ws4 = smallw_ref[r3:r3 + r4, 0:c4]                 # (16, 3),  f32
        h = jnp.maximum(jnp.dot(h, ws3, preferred_element_type=jnp.float32)
                        + seg("bs3"), 0.0)
        out_ref[...] = jnp.dot(h, ws4, preferred_element_type=jnp.float32) + seg("bs4")

    return kernel


_VMEM = pl.BlockSpec(memory_space=pltpu.MemorySpace.VMEM)


def multi_headed_mlp_forward(swir, mwir, lwir, params):
    lay = params["layout"]
    kernel = _make_kernel(lay)

    weight_args = [params[k] for k in ("wt_s", "wt_m", "wt_l",
                                       "w1_s", "w1_m", "w1_l",
                                       "ws1", "ws2",
                                       "bias_pack", "smallw_pack")]
    args = [swir, mwir, lwir] + weight_args
    B = swir.shape[0]
    out_dim = lay["out_dim"]

    # Advisory cost estimate (tiny kernel -> lets XLA schedule around it).
    flops = 0
    for x, wt, w1 in ((swir, params["wt_s"], params["w1_s"]),
                      (mwir, params["wt_m"], params["w1_m"]),
                      (lwir, params["wt_l"], params["w1_l"])):
        flops += 2 * B * x.shape[1] * wt.shape[1]
        flops += 2 * B * w1.shape[0] * w1.shape[1]
    r3, c3 = lay["ws3_shape"]
    r4, c4 = lay["ws4_shape"]
    flops += 2 * B * (params["ws1"].shape[0] * params["ws1"].shape[1]
                      + params["ws2"].shape[0] * params["ws2"].shape[1]
                      + r3 * c3 + r4 * c4)
    bytes_accessed = sum(int(np.prod(a.shape)) * a.dtype.itemsize for a in args)
    bytes_accessed += B * out_dim * 4
    cost = pl.CostEstimate(flops=flops, transcendentals=0,
                           bytes_accessed=bytes_accessed)
    out_shape = jax.ShapeDtypeStruct((B, out_dim), jnp.float32)

    # Batch-parallel grid as soon as B >= 16 (two sublane-aligned blocks) so
    # v7x's second TensorCore is used; below that, whole-array grid=() path.
    nb = 2 if (B >= 16 and B % 16 == 0) else 1
    if nb == 1:
        return pl.pallas_call(
            kernel,
            out_shape=out_shape,
            in_specs=[_VMEM] * len(args),
            out_specs=_VMEM,
            cost_estimate=cost,
        )(*args)

    bb = B // nb

    def batched(arr):
        shp = arr.shape
        return pl.BlockSpec((bb,) + shp[1:],
                            lambda i: (i,) + (0,) * (len(shp) - 1))

    def resident(arr):
        nd = arr.ndim
        return pl.BlockSpec(arr.shape, lambda i: (0,) * nd)

    in_specs = ([batched(swir), batched(mwir), batched(lwir)]
                + [resident(a) for a in weight_args])
    out_specs = pl.BlockSpec((bb, out_dim), lambda i: (i, 0))

    return pl.pallas_call(
        kernel,
        out_shape=out_shape,
        grid=(nb,),
        in_specs=in_specs,
        out_specs=out_specs,
        cost_estimate=cost,
        compiler_params=pltpu.CompilerParams(dimension_semantics=("parallel",)),
    )(*args)


# -------------------------- reference (pure JAX, torch semantics) ------------

def im2col(x, k, pad):
    B, L = x.shape
    xp = jnp.pad(x, ((0, 0), (pad, pad)))
    L_out = L - k + 2 * pad + 1
    idx = jnp.arange(L_out)[:, None] + jnp.arange(k)[None, :]
    return xp[:, idx]


def reference_forward(swir, mwir, lwir, ref_params, names):
    outs = []
    for name, x in zip(names, (swir, mwir, lwir)):
        p = ref_params[name]
        xcol = im2col(x, p["k"], p["pad"])                          # (B, L_out, K)
        conv = jnp.einsum("blk,ck->blc", xcol, p["wconv"]) + p["bconv"]
        conv = jnp.maximum(conv, 0.0)
        flat = jnp.transpose(conv, (0, 2, 1)).reshape(x.shape[0], -1)  # torch Flatten (NCL)
        h = jnp.maximum(flat @ p["w1_torch"].T + p["b1"], 0.0)
        outs.append(h)
    h = jnp.concatenate(outs, axis=1)
    w1, b1, w2, b2, w3, b3, w4, b4 = ref_params["shared"]
    h = jnp.maximum(h @ w1 + b1, 0.0)
    h = jnp.maximum(h @ w2 + b2, 0.0)
    h = jnp.maximum(h @ w3 + b3, 0.0)
    return h @ w4 + b4


# -------------------------- setup & run --------------------------------------

if __name__ == "__main__":
    in_sizes = [128, 96, 64]              # SWIR / MWIR / LWIR spectrum lengths
    conv_kernel_size = [60, 40, 20]
    conv_stride = 1
    conv_padding = 1
    hidden_sizes = [32, 32, 32]
    out_channels = 4
    output_size = 3
    names = ["swir", "mwir", "lwir"]

    key = jax.random.PRNGKey(0)
    keys = iter(jax.random.split(key, 32))

    def rnd(shape, scale):
        return np.asarray(jax.random.normal(next(keys), shape,
                                            dtype=jnp.float32)) * scale

    ref_params = {}
    for i, name in enumerate(names):
        k = conv_kernel_size[i]
        L = in_sizes[i]
        L_out = conv_out_size(L, k, conv_stride, conv_padding)
        H = hidden_sizes[i]
        flat = out_channels * L_out
        ref_params[name] = dict(
            L=L, k=k, pad=conv_padding,
            wconv=rnd((out_channels, k), 1.0 / np.sqrt(k)),   # torch (C,1,K) squeezed
            bconv=rnd((out_channels,), 0.02),
            w1_torch=rnd((H, flat), 1.0 / np.sqrt(flat)),     # torch Linear weight
            b1=rnd((H,), 0.02),
        )

    combined = sum(hidden_sizes)                              # 96
    dims = [combined, combined * 2, combined // 2, 16, output_size]
    shared = []
    for d_in, d_out in zip(dims[:-1], dims[1:]):
        shared.append(rnd((d_in, d_out), 1.0 / np.sqrt(d_in)))  # (in, out)
        shared.append(rnd((d_out,), 0.02))
    ref_params["shared"] = shared

    params_f32 = build_kernel_params(ref_params, names, conv_stride,
                                     conv_padding, jnp.float32)
    params_bf16 = build_kernel_params(ref_params, names, conv_stride,
                                      conv_padding, jnp.bfloat16)

    def make_inputs(B, seed):
        ks = jax.random.split(jax.random.PRNGKey(seed), 3)
        return tuple(jax.random.normal(ks[j], (B, in_sizes[j]), dtype=jnp.float32)
                     for j in range(3))

    # 1) B=8, f32, whole-array VMEM path (grid=()).
    swir8, mwir8, lwir8 = make_inputs(8, 1)
    out8 = jax.block_until_ready(
        multi_headed_mlp_forward(swir8, mwir8, lwir8, params_f32))
    ref8 = np.asarray(reference_forward(swir8, mwir8, lwir8, ref_params, names))
    assert out8.shape == (8, output_size), out8.shape
    np.testing.assert_allclose(np.asarray(out8), ref8, rtol=1e-4, atol=1e-4)

    # 2) B=16, f32, batch-parallel grid path (2 blocks -> both v7x TCs).
    swir16, mwir16, lwir16 = make_inputs(16, 2)
    out16 = jax.block_until_ready(
        multi_headed_mlp_forward(swir16, mwir16, lwir16, params_f32))
    ref16 = np.asarray(reference_forward(swir16, mwir16, lwir16, ref_params, names))
    assert out16.shape == (16, output_size), out16.shape
    np.testing.assert_allclose(np.asarray(out16), ref16, rtol=1e-4, atol=1e-4)

    # 3) B=8, bf16 matmul-operand fast path (v6e/v7x): loose precision check
    #    (deliberate correctness/precision tradeoff, not held to 1e-4).
    out_bf = jax.block_until_ready(
        multi_headed_mlp_forward(swir8, mwir8, lwir8, params_bf16))
    out_bf = np.asarray(out_bf)
    assert out_bf.shape == (8, output_size)
    assert np.all(np.isfinite(out_bf))
    assert np.max(np.abs(out_bf - ref8)) < 0.2

    print("KERNEL_OK")
</pallas_src>

<mosaic_0001>
module attributes {stable_mosaic.version = 11 : i64} {
  func.func @kernel(%arg0: memref<8x128xf32, #tpu.memory_space<vmem>>, %arg1: memref<8x96xf32, #tpu.memory_space<vmem>>, %arg2: memref<8x64xf32, #tpu.memory_space<vmem>>, %arg3: memref<128x384xf32, #tpu.memory_space<vmem>>, %arg4: memref<96x256xf32, #tpu.memory_space<vmem>>, %arg5: memref<64x256xf32, #tpu.memory_space<vmem>>, %arg6: memref<384x32xf32, #tpu.memory_space<vmem>>, %arg7: memref<256x32xf32, #tpu.memory_space<vmem>>, %arg8: memref<256x32xf32, #tpu.memory_space<vmem>>, %arg9: memref<96x192xf32, #tpu.memory_space<vmem>>, %arg10: memref<192x48xf32, #tpu.memory_space<vmem>>, %arg11: memref<1x1920xf32, #tpu.memory_space<vmem>>, %arg12: memref<64x128xf32, #tpu.memory_space<vmem>>, %arg13: memref<8x3xf32, #tpu.memory_space<vmem>>) attributes {dimension_semantics = [], scalar_prefetch = 0 : i64, scratch_operands = 0 : i64, tpu.core_type = #tpu.core_type<tc>} {
    %c0 = arith.constant 0 : index
    %c0_0 = arith.constant 0 : index
    %0 = vector.load %arg3[%c0, %c0_0] : memref<128x384xf32, #tpu.memory_space<vmem>>, vector<128x384xf32>
    %c0_1 = arith.constant 0 : index
    %c0_2 = arith.constant 0 : index
    %1 = vector.load %arg0[%c0_1, %c0_2] : memref<8x128xf32, #tpu.memory_space<vmem>>, vector<8x128xf32>
    %cst = arith.constant dense<0.000000e+00> : vector<8x384xf32>
    %2 = tpu.matmul %1, %0, %cst {dimension_numbers = #tpu.dot_dimension_numbers<[1], [0], [0], [1], [0, 0, 1, 1], [], []>} : vector<8x128xf32>, vector<128x384xf32>, vector<8x384xf32> -> vector<8x384xf32>
    %c0_3 = arith.constant 0 : index
    %c0_4 = arith.constant 0 : index
    %3 = vector.load %arg11[%c0_3, %c0_4] : memref<1x1920xf32, #tpu.memory_space<vmem>>, vector<1x384xf32>
    %4 = vector.broadcast %3 : vector<1x384xf32> to vector<8x384xf32>
    %5 = arith.addf %2, %4 : vector<8x384xf32>
    %cst_5 = arith.constant 0.000000e+00 : f32
    %6 = vector.broadcast %cst_5 : f32 to vector<8x384xf32>
    %7 = arith.maximumf %5, %6 : vector<8x384xf32>
    %c0_6 = arith.constant 0 : index
    %c0_7 = arith.constant 0 : index
    %8 = vector.load %arg6[%c0_6, %c0_7] : memref<384x32xf32, #tpu.memory_space<vmem>>, vector<384x32xf32>
    %cst_8 = arith.constant dense<0.000000e+00> : vector<8x32xf32>
    %9 = tpu.matmul %7, %8, %cst_8 {dimension_numbers = #tpu.dot_dimension_numbers<[1], [0], [0], [1], [0, 0, 1, 1], [], []>} : vector<8x384xf32>, vector<384x32xf32>, vector<8x32xf32> -> vector<8x32xf32>
    %c0_9 = arith.constant 0 : index
    %c384 = arith.constant 384 : index
    %10 = vector.load %arg11[%c0_9, %c384] : memref<1x1920xf32, #tpu.memory_space<vmem>>, vector<1x32xf32>
    %11 = vector.broadcast %10 : vector<1x32xf32> to vector<8x32xf32>
    %12 = arith.addf %9, %11 : vector<8x32xf32>
    %cst_10 = arith.constant 0.000000e+00 : f32
    %13 = vector.broadcast %cst_10 : f32 to vector<8x32xf32>
    %14 = arith.maximumf %12, %13 : vector<8x32xf32>
    %c0_11 = arith.constant 0 : index
    %c0_12 = arith.constant 0 : index
    %15 = vector.load %arg4[%c0_11, %c0_12] : memref<96x256xf32, #tpu.memory_space<vmem>>, vector<96x256xf32>
    %c0_13 = arith.constant 0 : index
    %c0_14 = arith.constant 0 : index
    %16 = vector.load %arg1[%c0_13, %c0_14] : memref<8x96xf32, #tpu.memory_space<vmem>>, vector<8x96xf32>
    %cst_15 = arith.constant dense<0.000000e+00> : vector<8x256xf32>
    %17 = tpu.matmul %16, %15, %cst_15 {dimension_numbers = #tpu.dot_dimension_numbers<[1], [0], [0], [1], [0, 0, 1, 1], [], []>} : vector<8x96xf32>, vector<96x256xf32>, vector<8x256xf32> -> vector<8x256xf32>
    %c0_16 = arith.constant 0 : index
    %c512 = arith.constant 512 : index
    %18 = vector.load %arg11[%c0_16, %c512] : memref<1x1920xf32, #tpu.memory_space<vmem>>, vector<1x256xf32>
    %19 = vector.broadcast %18 : vector<1x256xf32> to vector<8x256xf32>
    %20 = arith.addf %17, %19 : vector<8x256xf32>
    %cst_17 = arith.constant 0.000000e+00 : f32
    %21 = vector.broadcast %cst_17 : f32 to vector<8x256xf32>
    %22 = arith.maximumf %20, %21 : vector<8x256xf32>
    %c0_18 = arith.constant 0 : index
    %c0_19 = arith.constant 0 : index
    %23 = vector.load %arg7[%c0_18, %c0_19] : memref<256x32xf32, #tpu.memory_space<vmem>>, vector<256x32xf32>
    %cst_20 = arith.constant dense<0.000000e+00> : vector<8x32xf32>
    %24 = tpu.matmul %22, %23, %cst_20 {dimension_numbers = #tpu.dot_dimension_numbers<[1], [0], [0], [1], [0, 0, 1, 1], [], []>} : vector<8x256xf32>, vector<256x32xf32>, vector<8x32xf32> -> vector<8x32xf32>
    %c0_21 = arith.constant 0 : index
    %c768 = arith.constant 768 : index
    %25 = vector.load %arg11[%c0_21, %c768] : memref<1x1920xf32, #tpu.memory_space<vmem>>, vector<1x32xf32>
    %26 = vector.broadcast %25 : vector<1x32xf32> to vector<8x32xf32>
    %27 = arith.addf %24, %26 : vector<8x32xf32>
    %cst_22 = arith.constant 0.000000e+00 : f32
    %28 = vector.broadcast %cst_22 : f32 to vector<8x32xf32>
    %29 = arith.maximumf %27, %28 : vector<8x32xf32>
    %c0_23 = arith.constant 0 : index
    %c0_24 = arith.constant 0 : index
    %30 = vector.load %arg5[%c0_23, %c0_24] : memref<64x256xf32, #tpu.memory_space<vmem>>, vector<64x256xf32>
    %c0_25 = arith.constant 0 : index
    %c0_26 = arith.constant 0 : index
    %31 = vector.load %arg2[%c0_25, %c0_26] : memref<8x64xf32, #tpu.memory_space<vmem>>, vector<8x64xf32>
    %cst_27 = arith.constant dense<0.000000e+00> : vector<8x256xf32>
    %32 = tpu.matmul %31, %30, %cst_27 {dimension_numbers = #tpu.dot_dimension_numbers<[1], [0], [0], [1], [0, 0, 1, 1], [], []>} : vector<8x64xf32>, vector<64x256xf32>, vector<8x256xf32> -> vector<8x256xf32>
    %c0_28 = arith.constant 0 : index
    %c896 = arith.constant 896 : index
    %33 = vector.load %arg11[%c0_28, %c896] : memref<1x1920xf32, #tpu.memory_space<vmem>>, vector<1x256xf32>
    %34 = vector.broadcast %33 : vector<1x256xf32> to vector<8x256xf32>
    %35 = arith.addf %32, %34 : vector<8x256xf32>
    %cst_29 = arith.constant 0.000000e+00 : f32
    %36 = vector.broadcast %cst_29 : f32 to vector<8x256xf32>
    %37 = arith.maximumf %35, %36 : vector<8x256xf32>
    %c0_30 = arith.constant 0 : index
    %c0_31 = arith.constant 0 : index
    %38 = vector.load %arg8[%c0_30, %c0_31] : memref<256x32xf32, #tpu.memory_space<vmem>>, vector<256x32xf32>
    %cst_32 = arith.constant dense<0.000000e+00> : vector<8x32xf32>
    %39 = tpu.matmul %37, %38, %cst_32 {dimension_numbers = #tpu.dot_dimension_numbers<[1], [0], [0], [1], [0, 0, 1, 1], [], []>} : vector<8x256xf32>, vector<256x32xf32>, vector<8x32xf32> -> vector<8x32xf32>
    %c0_33 = arith.constant 0 : index
    %c1152 = arith.constant 1152 : index
    %40 = vector.load %arg11[%c0_33, %c1152] : memref<1x1920xf32, #tpu.memory_space<vmem>>, vector<1x32xf32>
    %41 = vector.broadcast %40 : vector<1x32xf32> to vector<8x32xf32>
    %42 = arith.addf %39, %41 : vector<8x32xf32>
    %cst_34 = arith.constant 0.000000e+00 : f32
    %43 = vector.broadcast %cst_34 : f32 to vector<8x32xf32>
    %44 = arith.maximumf %42, %43 : vector<8x32xf32>
    %c0_35 = arith.constant 0 : index
    %c0_36 = arith.constant 0 : index
    %45 = vector.load %arg9[%c0_35, %c0_36] : memref<96x192xf32, #tpu.memory_space<vmem>>, vector<32x192xf32>
    %c32 = arith.constant 32 : index
    %c0_37 = arith.constant 0 : index
    %46 = vector.load %arg9[%c32, %c0_37] : memref<96x192xf32, #tpu.memory_space<vmem>>, vector<32x192xf32>
    %c64 = arith.constant 64 : index
    %c0_38 = arith.constant 0 : index
    %47 = vector.load %arg9[%c64, %c0_38] : memref<96x192xf32, #tpu.memory_space<vmem>>, vector<32x192xf32>
    %cst_39 = arith.constant dense<0.000000e+00> : vector<8x192xf32>
    %48 = tpu.matmul %14, %45, %cst_39 {dimension_numbers = #tpu.dot_dimension_numbers<[1], [0], [0], [1], [0, 0, 1, 1], [], []>} : vector<8x32xf32>, vector<32x192xf32>, vector<8x192xf32> -> vector<8x192xf32>
    %cst_40 = arith.constant dense<0.000000e+00> : vector<8x192xf32>
    %49 = tpu.matmul %29, %46, %cst_40 {dimension_numbers = #tpu.dot_dimension_numbers<[1], [0], [0], [1], [0, 0, 1, 1], [], []>} : vector<8x32xf32>, vector<32x192xf32>, vector<8x192xf32> -> vector<8x192xf32>
    %50 = arith.addf %48, %49 : vector<8x192xf32>
    %cst_41 = arith.constant dense<0.000000e+00> : vector<8x192xf32>
    %51 = tpu.matmul %44, %47, %cst_41 {dimension_numbers = #tpu.dot_dimension_numbers<[1], [0], [0], [1], [0, 0, 1, 1], [], []>} : vector<8x32xf32>, vector<32x192xf32>, vector<8x192xf32> -> vector<8x192xf32>
    %52 = arith.addf %50, %51 : vector<8x192xf32>
    %c0_42 = arith.constant 0 : index
    %c1280 = arith.constant 1280 : index
    %53 = vector.load %arg11[%c0_42, %c1280] : memref<1x1920xf32, #tpu.memory_space<vmem>>, vector<1x192xf32>
    %54 = vector.broadcast %53 : vector<1x192xf32> to vector<8x192xf32>
    %55 = arith.addf %52, %54 : vector<8x192xf32>
    %cst_43 = arith.constant 0.000000e+00 : f32
    %56 = vector.broadcast %cst_43 : f32 to vector<8x192xf32>
    %57 = arith.maximumf %55, %56 : vector<8x192xf32>
    %c0_44 = arith.constant 0 : index
    %c0_45 = arith.constant 0 : index
    %58 = vector.load %arg10[%c0_44, %c0_45] : memref<192x48xf32, #tpu.memory_space<vmem>>, vector<192x48xf32>
    %cst_46 = arith.constant dense<0.000000e+00> : vector<8x48xf32>
    %59 = tpu.matmul %57, %58, %cst_46 {dimension_numbers = #tpu.dot_dimension_numbers<[1], [0], [0], [1], [0, 0, 1, 1], [], []>} : vector<8x192xf32>, vector<192x48xf32>, vector<8x48xf32> -> vector<8x48xf32>
    %c0_47 = arith.constant 0 : index
    %c1536 = arith.constant 1536 : index
    %60 = vector.load %arg11[%c0_47, %c1536] : memref<1x1920xf32, #tpu.memory_space<vmem>>, vector<1x48xf32>
    %61 = vector.broadcast %60 : vector<1x48xf32> to vector<8x48xf32>
    %62 = arith.addf %59, %61 : vector<8x48xf32>
    %cst_48 = arith.constant 0.000000e+00 : f32
    %63 = vector.broadcast %cst_48 : f32 to vector<8x48xf32>
    %64 = arith.maximumf %62, %63 : vector<8x48xf32>
    %c0_49 = arith.constant 0 : index
    %c0_50 = arith.constant 0 : index
    %65 = vector.load %arg12[%c0_49, %c0_50] : memref<64x128xf32, #tpu.memory_space<vmem>>, vector<48x16xf32>
    %c48 = arith.constant 48 : index
    %c0_51 = arith.constant 0 : index
    %66 = vector.load %arg12[%c48, %c0_51] : memref<64x128xf32, #tpu.memory_space<vmem>>, vector<16x3xf32>
    %cst_52 = arith.constant dense<0.000000e+00> : vector<8x16xf32>
    %67 = tpu.matmul %64, %65, %cst_52 {dimension_numbers = #tpu.dot_dimension_numbers<[1], [0], [0], [1], [0, 0, 1, 1], [], []>} : vector<8x48xf32>, vector<48x16xf32>, vector<8x16xf32> -> vector<8x16xf32>
    %c0_53 = arith.constant 0 : index
    %c1664 = arith.constant 1664 : index
    %68 = vector.load %arg11[%c0_53, %c1664] : memref<1x1920xf32, #tpu.memory_space<vmem>>, vector<1x16xf32>
    %69 = vector.broadcast %68 : vector<1x16xf32> to vector<8x16xf32>
    %70 = arith.addf %67, %69 : vector<8x16xf32>
    %cst_54 = arith.constant 0.000000e+00 : f32
    %71 = vector.broadcast %cst_54 : f32 to vector<8x16xf32>
    %72 = arith.maximumf %70, %71 : vector<8x16xf32>
    %cst_55 = arith.constant dense<0.000000e+00> : vector<8x3xf32>
    %73 = tpu.matmul %72, %66, %cst_55 {dimension_numbers = #tpu.dot_dimension_numbers<[1], [0], [0], [1], [0, 0, 1, 1], [], []>} : vector<8x16xf32>, vector<16x3xf32>, vector<8x3xf32> -> vector<8x3xf32>
    %c0_56 = arith.constant 0 : index
    %c1792 = arith.constant 1792 : index
    %74 = vector.load %arg11[%c0_56, %c1792] : memref<1x1920xf32, #tpu.memory_space<vmem>>, vector<1x3xf32>
    %75 = vector.broadcast %74 : vector<1x3xf32> to vector<8x3xf32>
    %76 = arith.addf %73, %75 : vector<8x3xf32>
    %c0_57 = arith.constant 0 : index
    %c0_58 = arith.constant 0 : index
    %77 = vector.load %arg13[%c0_57, %c0_58] : memref<8x3xf32, #tpu.memory_space<vmem>>, vector<8x3xf32>
    tpu.vector_store %arg13[%c0_57, %c0_58], %76 {strides = array<i32>} : memref<8x3xf32, #tpu.memory_space<vmem>>, vector<8x3xf32>,
    return
  }
}

</mosaic_0001>

<llo_original>
// kernel: tpu_custom_call.1
$region0: #{tpu_custom_call.1}
  #allocation0 [shape = 'u32[]', space=smem, size = 0x4, offset = 0x4, fixed_abs, tag = 'smem constant byte address 0x4 - core index']
  #allocation1 [shape = 'u32[144,128]{1,0:T(1,128)}', space=vmem, size = 0x12000, scoped, tag = 'internal scratch']
  %s0 = inlined_call_operand.vmem [shape: f32[8,128], index: 0, kind: input, shape index: {}]
  %s1 = inlined_call_operand.vmem [shape: f32[8,96], index: 1, kind: input, shape index: {}]
  %s2 = inlined_call_operand.vmem [shape: f32[8,64], index: 2, kind: input, shape index: {}]
  %s3 = inlined_call_operand.vmem [shape: f32[128,384], index: 3, kind: input, shape index: {}]
  %s4 = inlined_call_operand.vmem [shape: f32[96,256], index: 4, kind: input, shape index: {}]
  %s5 = inlined_call_operand.vmem [shape: f32[64,256], index: 5, kind: input, shape index: {}]
  %s6 = inlined_call_operand.vmem [shape: f32[384,32], index: 6, kind: input, shape index: {}]
  %s7 = inlined_call_operand.vmem [shape: f32[256,32], index: 7, kind: input, shape index: {}]
  %s8 = inlined_call_operand.vmem [shape: f32[256,32], index: 8, kind: input, shape index: {}]
  %s9 = inlined_call_operand.vmem [shape: f32[96,192], index: 9, kind: input, shape index: {}]
  %s10 = inlined_call_operand.vmem [shape: f32[192,48], index: 10, kind: input, shape index: {}]
  %s11 = inlined_call_operand.vmem [shape: f32[1,1920], index: 11, kind: input, shape index: {}]
  %s12 = inlined_call_operand.vmem [shape: f32[64,128], index: 12, kind: input, shape index: {}]
  %s13 = inlined_call_operand.vmem [shape: f32[8,3], index: 13, kind: output, shape index: {}]
  %s14 = sld [smem:[#allocation0]]
  $region62: #{tpu_custom_call.1} parent=0
    _
  %s16 = ssub.s32 1, %s14
  %s17 = scalar_select 0, %s16, %s14
  // Predicated region
  $region2: #{tpu_custom_call.1} parent=0 // pred_check
    _
  $region3: #{tpu_custom_call.1} parent=0 // pred_check_branch
    %19 = sbr.rel (0) target = $region5
  $region4: #{tpu_custom_call.1} parent=0 // pred_region
    _
  $region5: #{tpu_custom_call.1} parent=0 // pred_fallthru
    _
  // Predicated region
  $region6: #{tpu_custom_call.1} parent=0 // pred_check
    _
  $region7: #{tpu_custom_call.1} parent=0 // pred_check_branch
    %21 = sbr.rel (0) target = $region9
  $region8: #{tpu_custom_call.1} parent=0 // pred_region
    _
  $region9: #{tpu_custom_call.1} parent=0 // pred_fallthru
    _
  // Predicated region
  $region10: #{tpu_custom_call.1} parent=0 // pred_check
    _
  $region11: #{tpu_custom_call.1} parent=0 // pred_check_branch
    %23 = sbr.rel (0) target = $region13
  $region12: #{tpu_custom_call.1} parent=0 // pred_region
    _
  $region13: #{tpu_custom_call.1} parent=0 // pred_fallthru
    _
  // Predicated region
  $region14: #{tpu_custom_call.1} parent=0 // pred_check
    _
  $region15: #{tpu_custom_call.1} parent=0 // pred_check_branch
    %25 = sbr.rel (0) target = $region17
  $region16: #{tpu_custom_call.1} parent=0 // pred_region
    _
  $region17: #{tpu_custom_call.1} parent=0 // pred_fallthru
    _
  // Predicated region
  $region18: #{tpu_custom_call.1} parent=0 // pred_check
    _
  $region19: #{tpu_custom_call.1} parent=0 // pred_check_branch
    %27 = sbr.rel (0) target = $region21
  $region20: #{tpu_custom_call.1} parent=0 // pred_region
    _
  $region21: #{tpu_custom_call.1} parent=0 // pred_fallthru
    _
  // Predicated region
  $region22: #{tpu_custom_call.1} parent=0 // pred_check
    _
  $region23: #{tpu_custom_call.1} parent=0 // pred_check_branch
    %29 = sbr.rel (0) target = $region25
  $region24: #{tpu_custom_call.1} parent=0 // pred_region
    _
  $region25: #{tpu_custom_call.1} parent=0 // pred_fallthru
    _
  // Predicated region
  $region26: #{tpu_custom_call.1} parent=0 // pred_check
    _
  $region27: #{tpu_custom_call.1} parent=0 // pred_check_branch
    %31 = sbr.rel (0) target = $region29
  $region28: #{tpu_custom_call.1} parent=0 // pred_region
    _
  $region29: #{tpu_custom_call.1} parent=0 // pred_fallthru
    _
  // Predicated region
  $region30: #{tpu_custom_call.1} parent=0 // pred_check
    _
  $region31: #{tpu_custom_call.1} parent=0 // pred_check_branch
    %33 = sbr.rel (0) target = $region33
  $region32: #{tpu_custom_call.1} parent=0 // pred_region
    _
  $region33: #{tpu_custom_call.1} parent=0 // pred_fallthru
    _
  // Predicated region
  $region34: #{tpu_custom_call.1} parent=0 // pred_check
    _
  $region35: #{tpu_custom_call.1} parent=0 // pred_check_branch
    %35 = sbr.rel (0) target = $region37
  $region36: #{tpu_custom_call.1} parent=0 // pred_region
    _
  $region37: #{tpu_custom_call.1} parent=0 // pred_fallthru
    _
  // Predicated region
  $region38: #{tpu_custom_call.1} parent=0 // pred_check
    _
  $region39: #{tpu_custom_call.1} parent=0 // pred_check_branch
    %37 = sbr.rel (0) target = $region41
  $region40: #{tpu_custom_call.1} parent=0 // pred_region
    _
  $region41: #{tpu_custom_call.1} parent=0 // pred_fallthru
    _
  // Predicated region
  $region42: #{tpu_custom_call.1} parent=0 // pred_check
    _
  $region43: #{tpu_custom_call.1} parent=0 // pred_check_branch
    %39 = sbr.rel (0) target = $region45
  $region44: #{tpu_custom_call.1} parent=0 // pred_region
    _
  $region45: #{tpu_custom_call.1} parent=0 // pred_fallthru
    _
  // Predicated region
  $region46: #{tpu_custom_call.1} parent=0 // pred_check
    _
  $region47: #{tpu_custom_call.1} parent=0 // pred_check_branch
    %41 = sbr.rel (0) target = $region49
  $region48: #{tpu_custom_call.1} parent=0 // pred_region
    _
  $region49: #{tpu_custom_call.1} parent=0 // pred_fallthru
    _
  // Predicated region
  $region50: #{tpu_custom_call.1} parent=0 // pred_check
    _
  $region51: #{tpu_custom_call.1} parent=0 // pred_check_branch
    %43 = sbr.rel (0) target = $region53
  $region52: #{tpu_custom_call.1} parent=0 // pred_region
    _
  $region53: #{tpu_custom_call.1} parent=0 // pred_fallthru
    _
  %v44 = vld [vmem:[%s3] sm:$0xff]
  %v45 = vld [vmem:[%s3 + $0x8] sm:$0xff]
  %v46 = vld [vmem:[%s3 + $0x10] sm:$0xff]
  %v47 = vld [vmem:[%s3 + $0x18] sm:$0xff]
  %v48 = vld [vmem:[%s3 + $0x20] sm:$0xff]
  %v49 = vld [vmem:[%s3 + $0x28] sm:$0xff]
  %v50 = vld [vmem:[%s3 + $0x30] sm:$0xff]
  %v51 = vld [vmem:[%s3 + $0x38] sm:$0xff]
  %v52 = vld [vmem:[%s3 + $0x40] sm:$0xff]
  %v53 = vld [vmem:[%s3 + $0x48] sm:$0xff]
  %v54 = vld [vmem:[%s3 + $0x50] sm:$0xff]
  %v55 = vld [vmem:[%s3 + $0x58] sm:$0xff]
  %v56 = vld [vmem:[%s3 + $0x60] sm:$0xff]
  %v57 = vld [vmem:[%s3 + $0x68] sm:$0xff]
  %v58 = vld [vmem:[%s3 + $0x70] sm:$0xff]
  %v59 = vld [vmem:[%s3 + $0x78] sm:$0xff]
  %v60 = vld [vmem:[%s3 + $0x80] sm:$0xff]
  %v61 = vld [vmem:[%s3 + $0x88] sm:$0xff]
  %v62 = vld [vmem:[%s3 + $0x90] sm:$0xff]
  %v63 = vld [vmem:[%s3 + $0x98] sm:$0xff]
  %v64 = vld [vmem:[%s3 + $0xa0] sm:$0xff]
  %v65 = vld [vmem:[%s3 + $0xa8] sm:$0xff]
  %v66 = vld [vmem:[%s3 + $0xb0] sm:$0xff]
  %v67 = vld [vmem:[%s3 + $0xb8] sm:$0xff]
  %v68 = vld [vmem:[%s3 + $0xc0] sm:$0xff]
  %v69 = vld [vmem:[%s3 + $0xc8] sm:$0xff]
  %v70 = vld [vmem:[%s3 + $0xd0] sm:$0xff]
  %v71 = vld [vmem:[%s3 + $0xd8] sm:$0xff]
  %v72 = vld [vmem:[%s3 + $0xe0] sm:$0xff]
  %v73 = vld [vmem:[%s3 + $0xe8] sm:$0xff]
  %v74 = vld [vmem:[%s3 + $0xf0] sm:$0xff]
  %v75 = vld [vmem:[%s3 + $0xf8] sm:$0xff]
  %v76 = vld [vmem:[%s3 + $0x100] sm:$0xff]
  %v77 = vld [vmem:[%s3 + $0x108] sm:$0xff]
  %v78 = vld [vmem:[%s3 + $0x110] sm:$0xff]
  %v79 = vld [vmem:[%s3 + $0x118] sm:$0xff]
  %v80 = vld [vmem:[%s3 + $0x120] sm:$0xff]
  %v81 = vld [vmem:[%s3 + $0x128] sm:$0xff]
  %v82 = vld [vmem:[%s3 + $0x130] sm:$0xff]
  %v83 = vld [vmem:[%s3 + $0x138] sm:$0xff]
  %v84 = vld [vmem:[%s3 + $0x140] sm:$0xff]
  %v85 = vld [vmem:[%s3 + $0x148] sm:$0xff]
  %v86 = vld [vmem:[%s3 + $0x150] sm:$0xff]
  %v87 = vld [vmem:[%s3 + $0x158] sm:$0xff]
  %v88 = vld [vmem:[%s3 + $0x160] sm:$0xff]
  %v89 = vld [vmem:[%s3 + $0x168] sm:$0xff]
  %v90 = vld [vmem:[%s3 + $0x170] sm:$0xff]
  %v91 = vld [vmem:[%s3 + $0x178] sm:$0xff]
  %v92 = vld [vmem:[%s0] sm:$0xff]
  %v93 = vld [vmem:[%s11] sm:$0x7]
  %v95 = vlaneseq
  %v96 = vshrl.u32 %v95, 7
  %v97 = vsub.s32 0, %v96
  %v98 = vrot.slane %v93, %v97
  %v99 = vlaneseq
  %v100 = vshrl.u32 %v99, 7
  %v101 = vsub.s32 1, %v100
  %v102 = vrot.slane %v93, %v101
  %v103 = vlaneseq
  %v104 = vshrl.u32 %v103, 7
  %v105 = vsub.s32 2, %v104
  %v106 = vrot.slane %v93, %v105
  %110 = vmatprep.subr.mxu0 %v45
  %111 = vmatpush1.msra.mxu0 %v44
  %112 = vmatprep.subr.mxu0 %v48
  %113 = vmatpush1.msra.mxu0 %v47
  %114 = vmatprep.subr.mxu0 %v51
  %115 = vmatpush1.msra.mxu0 %v50
  %116 = vmatprep.subr.mxu0 %v54
  %117 = vmatpush1.msra.mxu0 %v53
  %118 = vmatprep.subr.mxu0 %v57
  %119 = vmatpush1.msra.mxu0 %v56
  %120 = vmatprep.subr.mxu0 %v60
  %121 = vmatpush1.msra.mxu0 %v59
  %122 = vmatprep.subr.mxu0 %v63
  %123 = vmatpush1.msra.mxu0 %v62
  %124 = vmatprep.subr.mxu0 %v66
  %125 = vmatpush1.msra.mxu0 %v65
  %126 = vmatprep.subr.mxu0 %v69
  %127 = vmatpush1.msra.mxu0 %v68
  %128 = vmatprep.subr.mxu0 %v72
  %129 = vmatpush1.msra.mxu0 %v71
  %130 = vmatprep.subr.mxu0 %v75
  %131 = vmatpush1.msra.mxu0 %v74
  %132 = vmatprep.subr.mxu0 %v78
  %133 = vmatpush1.msra.mxu0 %v77
  %134 = vmatprep.subr.mxu0 %v81
  %135 = vmatpush1.msra.mxu0 %v80
  %136 = vmatprep.subr.mxu0 %v84
  %137 = vmatpush1.msra.mxu0 %v83
  %138 = vmatprep.subr.mxu0 %v87
  %139 = vmatpush1.msra.mxu0 %v86
  %140 = vmatprep.subr.mxu0 %v90
  %141 = vmatpush1.msra.mxu0 %v89
  %142 = vmatprep.subr.mxu0 0.0
  %143 = vmatpush1.msra.mxu0 0.0
  %144 = vmatprep.subr.mxu0 0.0
  %145 = vmatpush1.msra.mxu0 0.0
  %146 = vmatprep.subr.mxu0 0.0
  %147 = vmatpush1.msra.mxu0 0.0
  %148 = vmatprep.subr.mxu0 0.0
  %149 = vmatpush1.msra.mxu0 0.0
  %150 = vmatprep.subr.mxu0 0.0
  %151 = vmatpush1.msra.mxu0 0.0
  %152 = vmatprep.subr.mxu0 0.0
  %153 = vmatpush1.msra.mxu0 0.0
  %154 = vmatprep.subr.mxu0 0.0
  %155 = vmatpush1.msra.mxu0 0.0
  %156 = vmatprep.subr.mxu0 0.0
  %157 = vmatpush1.msra.mxu0 0.0
  %158 = vmatprep.subr.mxu0 0.0
  %159 = vmatpush1.msra.mxu0 0.0
  %160 = vmatprep.subr.mxu0 0.0
  %161 = vmatpush1.msra.mxu0 0.0
  %162 = vmatprep.subr.mxu0 0.0
  %163 = vmatpush1.msra.mxu0 0.0
  %164 = vmatprep.subr.mxu0 0.0
  %165 = vmatpush1.msra.mxu0 0.0
  %166 = vmatprep.subr.mxu0 0.0
  %167 = vmatpush1.msra.mxu0 0.0
  %168 = vmatprep.subr.mxu0 0.0
  %169 = vmatpush1.msra.mxu0 0.0
  %170 = vmatprep.subr.mxu0 0.0
  %171 = vmatpush1.msra.mxu0 0.0
  %172 = vmatprep.subr.mxu0 0.0
  %173 = vmatpush1.msra.mxu0 0.0
  %174 = vmatprep.mubr.f32.mxu0 0.0
  %175 = vmatmul.mubr.f32.gmra.mrb[0].mxu0 %v92
  %v176 = vpop.f32.mrb[0].mxu0
  %v177 = vadd.f32 %v98, %v176
  %v178 = vpop.f32.mrb[0].mxu0
  %v179 = vadd.f32 %v102, %v178
  %180 = vdwg.mxu0
  %181 = vmatprep.subr.mxu0 0.0
  %182 = vmatpush1.msra.mxu0 %v46
  %183 = vmatprep.subr.mxu0 0.0
  %184 = vmatpush1.msra.mxu0 %v49
  %185 = vmatprep.subr.mxu0 0.0
  %186 = vmatpush1.msra.mxu0 %v52
  %187 = vmatprep.subr.mxu0 0.0
  %188 = vmatpush1.msra.mxu0 %v55
  %189 = vmatprep.subr.mxu0 0.0
  %190 = vmatpush1.msra.mxu0 %v58
  %191 = vmatprep.subr.mxu0 0.0
  %192 = vmatpush1.msra.mxu0 %v61
  %193 = vmatprep.subr.mxu0 0.0
  %194 = vmatpush1.msra.mxu0 %v64
  %195 = vmatprep.subr.mxu0 0.0
  %196 = vmatpush1.msra.mxu0 %v67
  %197 = vmatprep.subr.mxu0 0.0
  %198 = vmatpush1.msra.mxu0 %v70
  %199 = vmatprep.subr.mxu0 0.0
  %200 = vmatpush1.msra.mxu0 %v73
  %201 = vmatprep.subr.mxu0 0.0
  %202 = vmatpush1.msra.mxu0 %v76
  %203 = vmatprep.subr.mxu0 0.0
  %204 = vmatpush1.msra.mxu0 %v79
  %205 = vmatprep.subr.mxu0 0.0
  %206 = vmatpush1.msra.mxu0 %v82
  %207 = vmatprep.subr.mxu0 0.0
  %208 = vmatpush1.msra.mxu0 %v85
  %209 = vmatprep.subr.mxu0 0.0
  %210 = vmatpush1.msra.mxu0 %v88
  %211 = vmatprep.subr.mxu0 0.0
  %212 = vmatpush1.msra.mxu0 %v91
  %213 = vmatprep.subr.mxu0 0.0
  %214 = vmatpush1.msra.mxu0 0.0
  %215 = vmatprep.subr.mxu0 0.0
  %216 = vmatpush1.msra.mxu0 0.0
  %217 = vmatprep.subr.mxu0 0.0
  %218 = vmatpush1.msra.mxu0 0.0
  %219 = vmatprep.subr.mxu0 0.0
  %220 = vmatpush1.msra.mxu0 0.0
  %221 = vmatprep.subr.mxu0 0.0
  %222 = vmatpush1.msra.mxu0 0.0
  %223 = vmatprep.subr.mxu0 0.0
  %224 = vmatpush1.msra.mxu0 0.0
  %225 = vmatprep.subr.mxu0 0.0
  %226 = vmatpush1.msra.mxu0 0.0
  %227 = vmatprep.subr.mxu0 0.0
  %228 = vmatpush1.msra.mxu0 0.0
  %229 = vmatprep.subr.mxu0 0.0
  %230 = vmatpush1.msra.mxu0 0.0
  %231 = vmatprep.subr.mxu0 0.0
  %232 = vmatpush1.msra.mxu0 0.0
  %233 = vmatprep.subr.mxu0 0.0
  %234 = vmatpush1.msra.mxu0 0.0
  %235 = vmatprep.subr.mxu0 0.0
  %236 = vmatpush1.msra.mxu0 0.0
  %237 = vmatprep.subr.mxu0 0.0
  %238 = vmatpush1.msra.mxu0 0.0
  %239 = vmatprep.subr.mxu0 0.0
  %240 = vmatpush1.msra.mxu0 0.0
  %241 = vmatprep.subr.mxu0 0.0
  %242 = vmatpush1.msra.mxu0 0.0
  %243 = vmatprep.subr.mxu0 0.0
  %244 = vmatpush1.msra.mxu0 0.0
  %245 = vmatprep.mubr.f32.mxu0 0.0
  %246 = vmatmul.mubr.f32.gmra.mrb[0].mxu0 %v92
  %v247 = vpop.f32.mrb[0].mxu0
  %v248 = vadd.f32 %v106, %v247
  %v249 = vpop.f32.mrb[0].mxu0
  %250 = vdwg.mxu0
  %v251 = vmax.f32 %v177, 0.0
  %v252 = vmax.f32 %v179, 0.0
  %v253 = vmax.f32 %v248, 0.0
  %v254 = vld [vmem:[%s6] sm:$0xff]
  %v255 = vld [vmem:[%s6 + $0x8] sm:$0xff]
  %v256 = vld [vmem:[%s6 + $0x10] sm:$0xff]
  %v257 = vld [vmem:[%s6 + $0x18] sm:$0xff]
  %v258 = vld [vmem:[%s6 + $0x20] sm:$0xff]
  %v259 = vld [vmem:[%s6 + $0x28] sm:$0xff]
  %v260 = vld [vmem:[%s6 + $0x30] sm:$0xff]
  %v261 = vld [vmem:[%s6 + $0x38] sm:$0xff]
  %v262 = vld [vmem:[%s6 + $0x40] sm:$0xff]
  %v263 = vld [vmem:[%s6 + $0x48] sm:$0xff]
  %v264 = vld [vmem:[%s6 + $0x50] sm:$0xff]
  %v265 = vld [vmem:[%s6 + $0x58] sm:$0xff]
  %v266 = vld [vmem:[%s6 + $0x60] sm:$0xff]
  %v267 = vld [vmem:[%s6 + $0x68] sm:$0xff]
  %v268 = vld [vmem:[%s6 + $0x70] sm:$0xff]
  %v269 = vld [vmem:[%s6 + $0x78] sm:$0xff]
  %v270 = vld [vmem:[%s6 + $0x80] sm:$0xff]
  %v271 = vld [vmem:[%s6 + $0x88] sm:$0xff]
  %v272 = vld [vmem:[%s6 + $0x90] sm:$0xff]
  %v273 = vld [vmem:[%s6 + $0x98] sm:$0xff]
  %v274 = vld [vmem:[%s6 + $0xa0] sm:$0xff]
  %v275 = vld [vmem:[%s6 + $0xa8] sm:$0xff]
  %v276 = vld [vmem:[%s6 + $0xb0] sm:$0xff]
  %v277 = vld [vmem:[%s6 + $0xb8] sm:$0xff]
  %v278 = vld [vmem:[%s6 + $0xc0] sm:$0xff]
  %v279 = vld [vmem:[%s6 + $0xc8] sm:$0xff]
  %v280 = vld [vmem:[%s6 + $0xd0] sm:$0xff]
  %v281 = vld [vmem:[%s6 + $0xd8] sm:$0xff]
  %v282 = vld [vmem:[%s6 + $0xe0] sm:$0xff]
  %v283 = vld [vmem:[%s6 + $0xe8] sm:$0xff]
  %v284 = vld [vmem:[%s6 + $0xf0] sm:$0xff]
  %v285 = vld [vmem:[%s6 + $0xf8] sm:$0xff]
  %v286 = vld [vmem:[%s6 + $0x100] sm:$0xff]
  %v287 = vld [vmem:[%s6 + $0x108] sm:$0xff]
  %v288 = vld [vmem:[%s6 + $0x110] sm:$0xff]
  %v289 = vld [vmem:[%s6 + $0x118] sm:$0xff]
  %v290 = vld [vmem:[%s6 + $0x120] sm:$0xff]
  %v291 = vld [vmem:[%s6 + $0x128] sm:$0xff]
  %v292 = vld [vmem:[%s6 + $0x130] sm:$0xff]
  %v293 = vld [vmem:[%s6 + $0x138] sm:$0xff]
  %v294 = vld [vmem:[%s6 + $0x140] sm:$0xff]
  %v295 = vld [vmem:[%s6 + $0x148] sm:$0xff]
  %v296 = vld [vmem:[%s6 + $0x150] sm:$0xff]
  %v297 = vld [vmem:[%s6 + $0x158] sm:$0xff]
  %v298 = vld [vmem:[%s6 + $0x160] sm:$0xff]
  %v299 = vld [vmem:[%s6 + $0x168] sm:$0xff]
  %v300 = vld [vmem:[%s6 + $0x170] sm:$0xff]
  %v301 = vld [vmem:[%s6 + $0x178] sm:$0xff]
  %v302 = vld [vmem:[%s11 + $0x3] sm:$0x1]
  %v304 = vlaneseq
  %v305 = vshrl.u32 %v304, 7
  %v306 = vsub.s32 0, %v305
  %v307 = vrot.slane %v302, %v306
  %309 = vmatprep.subr.mxu0 0.0
  %310 = vmatpush1.msra.mxu0 %v254
  %311 = vmatprep.subr.mxu0 0.0
  %312 = vmatpush1.msra.mxu0 %v255
  %313 = vmatprep.subr.mxu0 0.0
  %314 = vmatpush1.msra.mxu0 %v256
  %315 = vmatprep.subr.mxu0 0.0
  %316 = vmatpush1.msra.mxu0 %v257
  %317 = vmatprep.subr.mxu0 0.0
  %318 = vmatpush1.msra.mxu0 %v258
  %319 = vmatprep.subr.mxu0 0.0
  %320 = vmatpush1.msra.mxu0 %v259
  %321 = vmatprep.subr.mxu0 0.0
  %322 = vmatpush1.msra.mxu0 %v260
  %323 = vmatprep.subr.mxu0 0.0
  %324 = vmatpush1.msra.mxu0 %v261
  %325 = vmatprep.subr.mxu0 0.0
  %326 = vmatpush1.msra.mxu0 %v262
  %327 = vmatprep.subr.mxu0 0.0
  %328 = vmatpush1.msra.mxu0 %v263
  %329 = vmatprep.subr.mxu0 0.0
  %330 = vmatpush1.msra.mxu0 %v264
  %331 = vmatprep.subr.mxu0 0.0
  %332 = vmatpush1.msra.mxu0 %v265
  %333 = vmatprep.subr.mxu0 0.0
  %334 = vmatpush1.msra.mxu0 %v266
  %335 = vmatprep.subr.mxu0 0.0
  %336 = vmatpush1.msra.mxu0 %v267
  %337 = vmatprep.subr.mxu0 0.0
  %338 = vmatpush1.msra.mxu0 %v268
  %339 = vmatprep.subr.mxu0 0.0
  %340 = vmatpush1.msra.mxu0 %v269
  %341 = vmatprep.subr.mxu0 0.0
  %342 = vmatpush1.msra.mxu0 %v270
  %343 = vmatprep.subr.mxu0 0.0
  %344 = vmatpush1.msra.mxu0 %v271
  %345 = vmatprep.subr.mxu0 0.0
  %346 = vmatpush1.msra.mxu0 %v272
  %347 = vmatprep.subr.mxu0 0.0
  %348 = vmatpush1.msra.mxu0 %v273
  %349 = vmatprep.subr.mxu0 0.0
  %350 = vmatpush1.msra.mxu0 %v274
  %351 = vmatprep.subr.mxu0 0.0
  %352 = vmatpush1.msra.mxu0 %v275
  %353 = vmatprep.subr.mxu0 0.0
  %354 = vmatpush1.msra.mxu0 %v276
  %355 = vmatprep.subr.mxu0 0.0
  %356 = vmatpush1.msra.mxu0 %v277
  %357 = vmatprep.subr.mxu0 0.0
  %358 = vmatpush1.msra.mxu0 %v278
  %359 = vmatprep.subr.mxu0 0.0
  %360 = vmatpush1.msra.mxu0 %v279
  %361 = vmatprep.subr.mxu0 0.0
  %362 = vmatpush1.msra.mxu0 %v280
  %363 = vmatprep.subr.mxu0 0.0
  %364 = vmatpush1.msra.mxu0 %v281
  %365 = vmatprep.subr.mxu0 0.0
  %366 = vmatpush1.msra.mxu0 %v282
  %367 = vmatprep.subr.mxu0 0.0
  %368 = vmatpush1.msra.mxu0 %v283
  %369 = vmatprep.subr.mxu0 0.0
  %370 = vmatpush1.msra.mxu0 %v284
  %371 = vmatprep.subr.mxu0 0.0
  %372 = vmatpush1.msra.mxu0 %v285
  %373 = vmatprep.mubr.f32.mxu0 %v252
  %374 = vmatmul.mubr.f32.gmra.mrb[0].mxu0 %v251
  %v375 = vpop.f32.mrb[0].mxu0
  %v376 = vadd.f32 %v307, %v375
  %v377 = vpop.f32.mrb[0].mxu0
  %378 = vdwg.mxu0
  %379 = vmatprep.subr.mxu0 0.0
  %380 = vmatpush1.msra.mxu0 %v286
  %381 = vmatprep.subr.mxu0 0.0
  %382 = vmatpush1.msra.mxu0 %v287
  %383 = vmatprep.subr.mxu0 0.0
  %384 = vmatpush1.msra.mxu0 %v288
  %385 = vmatprep.subr.mxu0 0.0
  %386 = vmatpush1.msra.mxu0 %v289
  %387 = vmatprep.subr.mxu0 0.0
  %388 = vmatpush1.msra.mxu0 %v290
  %389 = vmatprep.subr.mxu0 0.0
  %390 = vmatpush1.msra.mxu0 %v291
  %391 = vmatprep.subr.mxu0 0.0
  %392 = vmatpush1.msra.mxu0 %v292
  %393 = vmatprep.subr.mxu0 0.0
  %394 = vmatpush1.msra.mxu0 %v293
  %395 = vmatprep.subr.mxu0 0.0
  %396 = vmatpush1.msra.mxu0 %v294
  %397 = vmatprep.subr.mxu0 0.0
  %398 = vmatpush1.msra.mxu0 %v295
  %399 = vmatprep.subr.mxu0 0.0
  %400 = vmatpush1.msra.mxu0 %v296
  %401 = vmatprep.subr.mxu0 0.0
  %402 = vmatpush1.msra.mxu0 %v297
  %403 = vmatprep.subr.mxu0 0.0
  %404 = vmatpush1.msra.mxu0 %v298
  %405 = vmatprep.subr.mxu0 0.0
  %406 = vmatpush1.msra.mxu0 %v299
  %407 = vmatprep.subr.mxu0 0.0
  %408 = vmatpush1.msra.mxu0 %v300
  %409 = vmatprep.subr.mxu0 0.0
  %410 = vmatpush1.msra.mxu0 %v301
  %411 = vmatprep.subr.mxu0 0.0
  %412 = vmatpush1.msra.mxu0 0.0
  %413 = vmatprep.subr.mxu0 0.0
  %414 = vmatpush1.msra.mxu0 0.0
  %415 = vmatprep.subr.mxu0 0.0
  %416 = vmatpush1.msra.mxu0 0.0
  %417 = vmatprep.subr.mxu0 0.0
  %418 = vmatpush1.msra.mxu0 0.0
  %419 = vmatprep.subr.mxu0 0.0
  %420 = vmatpush1.msra.mxu0 0.0
  %421 = vmatprep.subr.mxu0 0.0
  %422 = vmatpush1.msra.mxu0 0.0
  %423 = vmatprep.subr.mxu0 0.0
  %424 = vmatpush1.msra.mxu0 0.0
  %425 = vmatprep.subr.mxu0 0.0
  %426 = vmatpush1.msra.mxu0 0.0
  %427 = vmatprep.subr.mxu0 0.0
  %428 = vmatpush1.msra.mxu0 0.0
  %429 = vmatprep.subr.mxu0 0.0
  %430 = vmatpush1.msra.mxu0 0.0
  %431 = vmatprep.subr.mxu0 0.0
  %432 = vmatpush1.msra.mxu0 0.0
  %433 = vmatprep.subr.mxu0 0.0
  %434 = vmatpush1.msra.mxu0 0.0
  %435 = vmatprep.subr.mxu0 0.0
  %436 = vmatpush1.msra.mxu0 0.0
  %437 = vmatprep.subr.mxu0 0.0
  %438 = vmatpush1.msra.mxu0 0.0
  %439 = vmatprep.subr.mxu0 0.0
  %440 = vmatpush1.msra.mxu0 0.0
  %441 = vmatprep.subr.mxu0 0.0
  %442 = vmatpush1.msra.mxu0 0.0
  %443 = vmatprep.mubr.f32.mxu0 0.0
  %444 = vmatmul.mubr.f32.gmra.mrb[0].mxu0 %v253
  %v445 = vpop.f32.mrb[0].mxu0
  %v446 = vadd.f32 %v376, %v445
  %v447 = vpop.f32.mrb[0].mxu0
  %448 = vdwg.mxu0
  %v449 = vmax.f32 %v446, 0.0
  %v450 = vld [vmem:[%s4] sm:$0xff]
  %v451 = vld [vmem:[%s4 + $0x8] sm:$0xff]
  %v452 = vld [vmem:[%s4 + $0x10] sm:$0xff]
  %v453 = vld [vmem:[%s4 + $0x18] sm:$0xff]
  %v454 = vld [vmem:[%s4 + $0x20] sm:$0xff]
  %v455 = vld [vmem:[%s4 + $0x28] sm:$0xff]
  %v456 = vld [vmem:[%s4 + $0x30] sm:$0xff]
  %v457 = vld [vmem:[%s4 + $0x38] sm:$0xff]
  %v458 = vld [vmem:[%s4 + $0x40] sm:$0xff]
  %v459 = vld [vmem:[%s4 + $0x48] sm:$0xff]
  %v460 = vld [vmem:[%s4 + $0x50] sm:$0xff]
  %v461 = vld [vmem:[%s4 + $0x58] sm:$0xff]
  %v462 = vld [vmem:[%s4 + $0x60] sm:$0xff]
  %v463 = vld [vmem:[%s4 + $0x68] sm:$0xff]
  %v464 = vld [vmem:[%s4 + $0x70] sm:$0xff]
  %v465 = vld [vmem:[%s4 + $0x78] sm:$0xff]
  %v466 = vld [vmem:[%s4 + $0x80] sm:$0xff]
  %v467 = vld [vmem:[%s4 + $0x88] sm:$0xff]
  %v468 = vld [vmem:[%s4 + $0x90] sm:$0xff]
  %v469 = vld [vmem:[%s4 + $0x98] sm:$0xff]
  %v470 = vld [vmem:[%s4 + $0xa0] sm:$0xff]
  %v471 = vld [vmem:[%s4 + $0xa8] sm:$0xff]
  %v472 = vld [vmem:[%s4 + $0xb0] sm:$0xff]
  %v473 = vld [vmem:[%s4 + $0xb8] sm:$0xff]
  %v474 = vld [vmem:[%s1] sm:$0xff]
  %v475 = vld [vmem:[%s11 + $0x4] sm:$0x3]
  %v477 = vlaneseq
  %v478 = vshrl.u32 %v477, 7
  %v479 = vsub.s32 0, %v478
  %v480 = vrot.slane %v475, %v479
  %v481 = vlaneseq
  %v482 = vshrl.u32 %v481, 7
  %v483 = vsub.s32 1, %v482
  %v484 = vrot.slane %v475, %v483
  %vm487 = vcmask 785408
  %v489 = vsel %vm487, %v474, 0
  %491 = vmatprep.subr.mxu0 %v451
  %492 = vmatpush1.msra.mxu0 %v450
  %493 = vmatprep.subr.mxu0 %v453
  %494 = vmatpush1.msra.mxu0 %v452
  %495 = vmatprep.subr.mxu0 %v455
  %496 = vmatpush1.msra.mxu0 %v454
  %497 = vmatprep.subr.mxu0 %v457
  %498 = vmatpush1.msra.mxu0 %v456
  %499 = vmatprep.subr.mxu0 %v459
  %500 = vmatpush1.msra.mxu0 %v458
  %501 = vmatprep.subr.mxu0 %v461
  %502 = vmatpush1.msra.mxu0 %v460
  %503 = vmatprep.subr.mxu0 %v463
  %504 = vmatpush1.msra.mxu0 %v462
  %505 = vmatprep.subr.mxu0 %v465
  %506 = vmatpush1.msra.mxu0 %v464
  %507 = vmatprep.subr.mxu0 %v467
  %508 = vmatpush1.msra.mxu0 %v466
  %509 = vmatprep.subr.mxu0 %v469
  %510 = vmatpush1.msra.mxu0 %v468
  %511 = vmatprep.subr.mxu0 %v471
  %512 = vmatpush1.msra.mxu0 %v470
  %513 = vmatprep.subr.mxu0 %v473
  %514 = vmatpush1.msra.mxu0 %v472
  %515 = vmatprep.subr.mxu0 0.0
  %516 = vmatpush1.msra.mxu0 0.0
  %517 = vmatprep.subr.mxu0 0.0
  %518 = vmatpush1.msra.mxu0 0.0
  %519 = vmatprep.subr.mxu0 0.0
  %520 = vmatpush1.msra.mxu0 0.0
  %521 = vmatprep.subr.mxu0 0.0
  %522 = vmatpush1.msra.mxu0 0.0
  %523 = vmatprep.subr.mxu0 0.0
  %524 = vmatpush1.msra.mxu0 0.0
  %525 = vmatprep.subr.mxu0 0.0
  %526 = vmatpush1.msra.mxu0 0.0
  %527 = vmatprep.subr.mxu0 0.0
  %528 = vmatpush1.msra.mxu0 0.0
  %529 = vmatprep.subr.mxu0 0.0
  %530 = vmatpush1.msra.mxu0 0.0
  %531 = vmatprep.subr.mxu0 0.0
  %532 = vmatpush1.msra.mxu0 0.0
  %533 = vmatprep.subr.mxu0 0.0
  %534 = vmatpush1.msra.mxu0 0.0
  %535 = vmatprep.subr.mxu0 0.0
  %536 = vmatpush1.msra.mxu0 0.0
  %537 = vmatprep.subr.mxu0 0.0
  %538 = vmatpush1.msra.mxu0 0.0
  %539 = vmatprep.subr.mxu0 0.0
  %540 = vmatpush1.msra.mxu0 0.0
  %541 = vmatprep.subr.mxu0 0.0
  %542 = vmatpush1.msra.mxu0 0.0
  %543 = vmatprep.subr.mxu0 0.0
  %544 = vmatpush1.msra.mxu0 0.0
  %545 = vmatprep.subr.mxu0 0.0
  %546 = vmatpush1.msra.mxu0 0.0
  %547 = vmatprep.subr.mxu0 0.0
  %548 = vmatpush1.msra.mxu0 0.0
  %549 = vmatprep.subr.mxu0 0.0
  %550 = vmatpush1.msra.mxu0 0.0
  %551 = vmatprep.subr.mxu0 0.0
  %552 = vmatpush1.msra.mxu0 0.0
  %553 = vmatprep.subr.mxu0 0.0
  %554 = vmatpush1.msra.mxu0 0.0
  %555 = vmatprep.mubr.f32.mxu0 0.0
  %556 = vmatmul.mubr.f32.gmra.mrb[0].mxu0 %v489
  %v557 = vpop.f32.mrb[0].mxu0
  %v558 = vadd.f32 %v480, %v557
  %v559 = vpop.f32.mrb[0].mxu0
  %v560 = vadd.f32 %v484, %v559
  %561 = vdwg.mxu0
  %v562 = vmax.f32 %v558, 0.0
  %v563 = vmax.f32 %v560, 0.0
  %v564 = vld [vmem:[%s7] sm:$0xff]
  %v565 = vld [vmem:[%s7 + $0x8] sm:$0xff]
  %v566 = vld [vmem:[%s7 + $0x10] sm:$0xff]
  %v567 = vld [vmem:[%s7 + $0x18] sm:$0xff]
  %v568 = vld [vmem:[%s7 + $0x20] sm:$0xff]
  %v569 = vld [vmem:[%s7 + $0x28] sm:$0xff]
  %v570 = vld [vmem:[%s7 + $0x30] sm:$0xff]
  %v571 = vld [vmem:[%s7 + $0x38] sm:$0xff]
  %v572 = vld [vmem:[%s7 + $0x40] sm:$0xff]
  %v573 = vld [vmem:[%s7 + $0x48] sm:$0xff]
  %v574 = vld [vmem:[%s7 + $0x50] sm:$0xff]
  %v575 = vld [vmem:[%s7 + $0x58] sm:$0xff]
  %v576 = vld [vmem:[%s7 + $0x60] sm:$0xff]
  %v577 = vld [vmem:[%s7 + $0x68] sm:$0xff]
  %v578 = vld [vmem:[%s7 + $0x70] sm:$0xff]
  %v579 = vld [vmem:[%s7 + $0x78] sm:$0xff]
  %v580 = vld [vmem:[%s7 + $0x80] sm:$0xff]
  %v581 = vld [vmem:[%s7 + $0x88] sm:$0xff]
  %v582 = vld [vmem:[%s7 + $0x90] sm:$0xff]
  %v583 = vld [vmem:[%s7 + $0x98] sm:$0xff]
  %v584 = vld [vmem:[%s7 + $0xa0] sm:$0xff]
  %v585 = vld [vmem:[%s7 + $0xa8] sm:$0xff]
  %v586 = vld [vmem:[%s7 + $0xb0] sm:$0xff]
  %v587 = vld [vmem:[%s7 + $0xb8] sm:$0xff]
  %v588 = vld [vmem:[%s7 + $0xc0] sm:$0xff]
  %v589 = vld [vmem:[%s7 + $0xc8] sm:$0xff]
  %v590 = vld [vmem:[%s7 + $0xd0] sm:$0xff]
  %v591 = vld [vmem:[%s7 + $0xd8] sm:$0xff]
  %v592 = vld [vmem:[%s7 + $0xe0] sm:$0xff]
  %v593 = vld [vmem:[%s7 + $0xe8] sm:$0xff]
  %v594 = vld [vmem:[%s7 + $0xf0] sm:$0xff]
  %v595 = vld [vmem:[%s7 + $0xf8] sm:$0xff]
  %v596 = vld [vmem:[%s11 + $0x6] sm:$0x1]
  %v598 = vlaneseq
  %v599 = vshrl.u32 %v598, 7
  %v600 = vsub.s32 0, %v599
  %v601 = vrot.slane %v596, %v600
  %603 = vmatprep.subr.mxu0 0.0
  %604 = vmatpush1.msra.mxu0 %v564
  %605 = vmatprep.subr.mxu0 0.0
  %606 = vmatpush1.msra.mxu0 %v565
  %607 = vmatprep.subr.mxu0 0.0
  %608 = vmatpush1.msra.mxu0 %v566
  %609 = vmatprep.subr.mxu0 0.0
  %610 = vmatpush1.msra.mxu0 %v567
  %611 = vmatprep.subr.mxu0 0.0
  %612 = vmatpush1.msra.mxu0 %v568
  %613 = vmatprep.subr.mxu0 0.0
  %614 = vmatpush1.msra.mxu0 %v569
  %615 = vmatprep.subr.mxu0 0.0
  %616 = vmatpush1.msra.mxu0 %v570
  %617 = vmatprep.subr.mxu0 0.0
  %618 = vmatpush1.msra.mxu0 %v571
  %619 = vmatprep.subr.mxu0 0.0
  %620 = vmatpush1.msra.mxu0 %v572
  %621 = vmatprep.subr.mxu0 0.0
  %622 = vmatpush1.msra.mxu0 %v573
  %623 = vmatprep.subr.mxu0 0.0
  %624 = vmatpush1.msra.mxu0 %v574
  %625 = vmatprep.subr.mxu0 0.0
  %626 = vmatpush1.msra.mxu0 %v575
  %627 = vmatprep.subr.mxu0 0.0
  %628 = vmatpush1.msra.mxu0 %v576
  %629 = vmatprep.subr.mxu0 0.0
  %630 = vmatpush1.msra.mxu0 %v577
  %631 = vmatprep.subr.mxu0 0.0
  %632 = vmatpush1.msra.mxu0 %v578
  %633 = vmatprep.subr.mxu0 0.0
  %634 = vmatpush1.msra.mxu0 %v579
  %635 = vmatprep.subr.mxu0 0.0
  %636 = vmatpush1.msra.mxu0 %v580
  %637 = vmatprep.subr.mxu0 0.0
  %638 = vmatpush1.msra.mxu0 %v581
  %639 = vmatprep.subr.mxu0 0.0
  %640 = vmatpush1.msra.mxu0 %v582
  %641 = vmatprep.subr.mxu0 0.0
  %642 = vmatpush1.msra.mxu0 %v583
  %643 = vmatprep.subr.mxu0 0.0
  %644 = vmatpush1.msra.mxu0 %v584
  %645 = vmatprep.subr.mxu0 0.0
  %646 = vmatpush1.msra.mxu0 %v585
  %647 = vmatprep.subr.mxu0 0.0
  %648 = vmatpush1.msra.mxu0 %v586
  %649 = vmatprep.subr.mxu0 0.0
  %650 = vmatpush1.msra.mxu0 %v587
  %651 = vmatprep.subr.mxu0 0.0
  %652 = vmatpush1.msra.mxu0 %v588
  %653 = vmatprep.subr.mxu0 0.0
  %654 = vmatpush1.msra.mxu0 %v589
  %655 = vmatprep.subr.mxu0 0.0
  %656 = vmatpush1.msra.mxu0 %v590
  %657 = vmatprep.subr.mxu0 0.0
  %658 = vmatpush1.msra.mxu0 %v591
  %659 = vmatprep.subr.mxu0 0.0
  %660 = vmatpush1.msra.mxu0 %v592
  %661 = vmatprep.subr.mxu0 0.0
  %662 = vmatpush1.msra.mxu0 %v593
  %663 = vmatprep.subr.mxu0 0.0
  %664 = vmatpush1.msra.mxu0 %v594
  %665 = vmatprep.subr.mxu0 0.0
  %666 = vmatpush1.msra.mxu0 %v595
  %667 = vmatprep.mubr.f32.mxu0 %v563
  %668 = vmatmul.mubr.f32.gmra.mrb[0].mxu0 %v562
  %v669 = vpop.f32.mrb[0].mxu0
  %v670 = vadd.f32 %v601, %v669
  %v671 = vpop.f32.mrb[0].mxu0
  %672 = vdwg.mxu0
  %v673 = vmax.f32 %v670, 0.0
  %v674 = vld [vmem:[%s5] sm:$0xff]
  %v675 = vld [vmem:[%s5 + $0x8] sm:$0xff]
  %v676 = vld [vmem:[%s5 + $0x10] sm:$0xff]
  %v677 = vld [vmem:[%s5 + $0x18] sm:$0xff]
  %v678 = vld [vmem:[%s5 + $0x20] sm:$0xff]
  %v679 = vld [vmem:[%s5 + $0x28] sm:$0xff]
  %v680 = vld [vmem:[%s5 + $0x30] sm:$0xff]
  %v681 = vld [vmem:[%s5 + $0x38] sm:$0xff]
  %v682 = vld [vmem:[%s5 + $0x40] sm:$0xff]
  %v683 = vld [vmem:[%s5 + $0x48] sm:$0xff]
  %v684 = vld [vmem:[%s5 + $0x50] sm:$0xff]
  %v685 = vld [vmem:[%s5 + $0x58] sm:$0xff]
  %v686 = vld [vmem:[%s5 + $0x60] sm:$0xff]
  %v687 = vld [vmem:[%s5 + $0x68] sm:$0xff]
  %v688 = vld [vmem:[%s5 + $0x70] sm:$0xff]
  %v689 = vld [vmem:[%s5 + $0x78] sm:$0xff]
  %v690 = vld [vmem:[%s2] sm:$0xff]
  %v691 = vld [vmem:[%s11 + $0x7] sm:$0x3]
  %v693 = vlaneseq
  %v694 = vshrl.u32 %v693, 7
  %v695 = vsub.s32 0, %v694
  %v696 = vrot.slane %v691, %v695
  %v697 = vlaneseq
  %v698 = vshrl.u32 %v697, 7
  %v699 = vsub.s32 1, %v698
  %v700 = vrot.slane %v691, %v699
  %vm703 = vcmask 523264
  %v705 = vsel %vm703, %v690, 0
  %707 = vmatprep.subr.mxu0 %v675
  %708 = vmatpush1.msra.mxu0 %v674
  %709 = vmatprep.subr.mxu0 %v677
  %710 = vmatpush1.msra.mxu0 %v676
  %711 = vmatprep.subr.mxu0 %v679
  %712 = vmatpush1.msra.mxu0 %v678
  %713 = vmatprep.subr.mxu0 %v681
  %714 = vmatpush1.msra.mxu0 %v680
  %715 = vmatprep.subr.mxu0 %v683
  %716 = vmatpush1.msra.mxu0 %v682
  %717 = vmatprep.subr.mxu0 %v685
  %718 = vmatpush1.msra.mxu0 %v684
  %719 = vmatprep.subr.mxu0 %v687
  %720 = vmatpush1.msra.mxu0 %v686
  %721 = vmatprep.subr.mxu0 %v689
  %722 = vmatpush1.msra.mxu0 %v688
  %723 = vmatprep.subr.mxu0 0.0
  %724 = vmatpush1.msra.mxu0 0.0
  %725 = vmatprep.subr.mxu0 0.0
  %726 = vmatpush1.msra.mxu0 0.0
  %727 = vmatprep.subr.mxu0 0.0
  %728 = vmatpush1.msra.mxu0 0.0
  %729 = vmatprep.subr.mxu0 0.0
  %730 = vmatpush1.msra.mxu0 0.0
  %731 = vmatprep.subr.mxu0 0.0
  %732 = vmatpush1.msra.mxu0 0.0
  %733 = vmatprep.subr.mxu0 0.0
  %734 = vmatpush1.msra.mxu0 0.0
  %735 = vmatprep.subr.mxu0 0.0
  %736 = vmatpush1.msra.mxu0 0.0
  %737 = vmatprep.subr.mxu0 0.0
  %738 = vmatpush1.msra.mxu0 0.0
  %739 = vmatprep.subr.mxu0 0.0
  %740 = vmatpush1.msra.mxu0 0.0
  %741 = vmatprep.subr.mxu0 0.0
  %742 = vmatpush1.msra.mxu0 0.0
  %743 = vmatprep.subr.mxu0 0.0
  %744 = vmatpush1.msra.mxu0 0.0
  %745 = vmatprep.subr.mxu0 0.0
  %746 = vmatpush1.msra.mxu0 0.0
  %747 = vmatprep.subr.mxu0 0.0
  %748 = vmatpush1.msra.mxu0 0.0
  %749 = vmatprep.subr.mxu0 0.0
  %750 = vmatpush1.msra.mxu0 0.0
  %751 = vmatprep.subr.mxu0 0.0
  %752 = vmatpush1.msra.mxu0 0.0
  %753 = vmatprep.subr.mxu0 0.0
  %754 = vmatpush1.msra.mxu0 0.0
  %755 = vmatprep.subr.mxu0 0.0
  %756 = vmatpush1.msra.mxu0 0.0
  %757 = vmatprep.subr.mxu0 0.0
  %758 = vmatpush1.msra.mxu0 0.0
  %759 = vmatprep.subr.mxu0 0.0
  %760 = vmatpush1.msra.mxu0 0.0
  %761 = vmatprep.subr.mxu0 0.0
  %762 = vmatpush1.msra.mxu0 0.0
  %763 = vmatprep.subr.mxu0 0.0
  %764 = vmatpush1.msra.mxu0 0.0
  %765 = vmatprep.subr.mxu0 0.0
  %766 = vmatpush1.msra.mxu0 0.0
  %767 = vmatprep.subr.mxu0 0.0
  %768 = vmatpush1.msra.mxu0 0.0
  %769 = vmatprep.subr.mxu0 0.0
  %770 = vmatpush1.msra.mxu0 0.0
  %771 = vmatprep.mubr.f32.mxu0 0.0
  %772 = vmatmul.mubr.f32.gmra.mrb[0].mxu0 %v705
  %v773 = vpop.f32.mrb[0].mxu0
  %v774 = vadd.f32 %v696, %v773
  %v775 = vpop.f32.mrb[0].mxu0
  %v776 = vadd.f32 %v700, %v775
  %777 = vdwg.mxu0
  %v778 = vmax.f32 %v774, 0.0
  %v779 = vmax.f32 %v776, 0.0
  %v780 = vld [vmem:[%s8] sm:$0xff]
  %v781 = vld [vmem:[%s8 + $0x8] sm:$0xff]
  %v782 = vld [vmem:[%s8 + $0x10] sm:$0xff]
  %v783 = vld [vmem:[%s8 + $0x18] sm:$0xff]
  %v784 = vld [vmem:[%s8 + $0x20] sm:$0xff]
  %v785 = vld [vmem:[%s8 + $0x28] sm:$0xff]
  %v786 = vld [vmem:[%s8 + $0x30] sm:$0xff]
  %v787 = vld [vmem:[%s8 + $0x38] sm:$0xff]
  %v788 = vld [vmem:[%s8 + $0x40] sm:$0xff]
  %v789 = vld [vmem:[%s8 + $0x48] sm:$0xff]
  %v790 = vld [vmem:[%s8 + $0x50] sm:$0xff]
  %v791 = vld [vmem:[%s8 + $0x58] sm:$0xff]
  %v792 = vld [vmem:[%s8 + $0x60] sm:$0xff]
  %v793 = vld [vmem:[%s8 + $0x68] sm:$0xff]
  %v794 = vld [vmem:[%s8 + $0x70] sm:$0xff]
  %v795 = vld [vmem:[%s8 + $0x78] sm:$0xff]
  %v796 = vld [vmem:[%s8 + $0x80] sm:$0xff]
  %v797 = vld [vmem:[%s8 + $0x88] sm:$0xff]
  %v798 = vld [vmem:[%s8 + $0x90] sm:$0xff]
  %v799 = vld [vmem:[%s8 + $0x98] sm:$0xff]
  %v800 = vld [vmem:[%s8 + $0xa0] sm:$0xff]
  %v801 = vld [vmem:[%s8 + $0xa8] sm:$0xff]
  %v802 = vld [vmem:[%s8 + $0xb0] sm:$0xff]
  %v803 = vld [vmem:[%s8 + $0xb8] sm:$0xff]
  %v804 = vld [vmem:[%s8 + $0xc0] sm:$0xff]
  %v805 = vld [vmem:[%s8 + $0xc8] sm:$0xff]
  %v806 = vld [vmem:[%s8 + $0xd0] sm:$0xff]
  %v807 = vld [vmem:[%s8 + $0xd8] sm:$0xff]
  %v808 = vld [vmem:[%s8 + $0xe0] sm:$0xff]
  %v809 = vld [vmem:[%s8 + $0xe8] sm:$0xff]
  %v810 = vld [vmem:[%s8 + $0xf0] sm:$0xff]
  %v811 = vld [vmem:[%s8 + $0xf8] sm:$0xff]
  %v812 = vld [vmem:[%s11 + $0x9] sm:$0x1]
  %v814 = vlaneseq
  %v815 = vshrl.u32 %v814, 7
  %v816 = vsub.s32 0, %v815
  %v817 = vrot.slane %v812, %v816
  %819 = vmatprep.subr.mxu0 0.0
  %820 = vmatpush1.msra.mxu0 %v780
  %821 = vmatprep.subr.mxu0 0.0
  %822 = vmatpush1.msra.mxu0 %v781
  %823 = vmatprep.subr.mxu0 0.0
  %824 = vmatpush1.msra.mxu0 %v782
  %825 = vmatprep.subr.mxu0 0.0
  %826 = vmatpush1.msra.mxu0 %v783
  %827 = vmatprep.subr.mxu0 0.0
  %828 = vmatpush1.msra.mxu0 %v784
  %829 = vmatprep.subr.mxu0 0.0
  %830 = vmatpush1.msra.mxu0 %v785
  %831 = vmatprep.subr.mxu0 0.0
  %832 = vmatpush1.msra.mxu0 %v786
  %833 = vmatprep.subr.mxu0 0.0
  %834 = vmatpush1.msra.mxu0 %v787
  %835 = vmatprep.subr.mxu0 0.0
  %836 = vmatpush1.msra.mxu0 %v788
  %837 = vmatprep.subr.mxu0 0.0
  %838 = vmatpush1.msra.mxu0 %v789
  %839 = vmatprep.subr.mxu0 0.0
  %840 = vmatpush1.msra.mxu0 %v790
  %841 = vmatprep.subr.mxu0 0.0
  %842 = vmatpush1.msra.mxu0 %v791
  %843 = vmatprep.subr.mxu0 0.0
  %844 = vmatpush1.msra.mxu0 %v792
  %845 = vmatprep.subr.mxu0 0.0
  %846 = vmatpush1.msra.mxu0 %v793
  %847 = vmatprep.subr.mxu0 0.0
  %848 = vmatpush1.msra.mxu0 %v794
  %849 = vmatprep.subr.mxu0 0.0
  %850 = vmatpush1.msra.mxu0 %v795
  %851 = vmatprep.subr.mxu0 0.0
  %852 = vmatpush1.msra.mxu0 %v796
  %853 = vmatprep.subr.mxu0 0.0
  %854 = vmatpush1.msra.mxu0 %v797
  %855 = vmatprep.subr.mxu0 0.0
  %856 = vmatpush1.msra.mxu0 %v798
  %857 = vmatprep.subr.mxu0 0.0
  %858 = vmatpush1.msra.mxu0 %v799
  %859 = vmatprep.subr.mxu0 0.0
  %860 = vmatpush1.msra.mxu0 %v800
  %861 = vmatprep.subr.mxu0 0.0
  %862 = vmatpush1.msra.mxu0 %v801
  %863 = vmatprep.subr.mxu0 0.0
  %864 = vmatpush1.msra.mxu0 %v802
  %865 = vmatprep.subr.mxu0 0.0
  %866 = vmatpush1.msra.mxu0 %v803
  %867 = vmatprep.subr.mxu0 0.0
  %868 = vmatpush1.msra.mxu0 %v804
  %869 = vmatprep.subr.mxu0 0.0
  %870 = vmatpush1.msra.mxu0 %v805
  %871 = vmatprep.subr.mxu0 0.0
  %872 = vmatpush1.msra.mxu0 %v806
  %873 = vmatprep.subr.mxu0 0.0
  %874 = vmatpush1.msra.mxu0 %v807
  %875 = vmatprep.subr.mxu0 0.0
  %876 = vmatpush1.msra.mxu0 %v808
  %877 = vmatprep.subr.mxu0 0.0
  %878 = vmatpush1.msra.mxu0 %v809
  %879 = vmatprep.subr.mxu0 0.0
  %880 = vmatpush1.msra.mxu0 %v810
  %881 = vmatprep.subr.mxu0 0.0
  %882 = vmatpush1.msra.mxu0 %v811
  %883 = vmatprep.mubr.f32.mxu0 %v779
  %884 = vmatmul.mubr.f32.gmra.mrb[0].mxu0 %v778
  %v885 = vpop.f32.mrb[0].mxu0
  %v886 = vadd.f32 %v817, %v885
  %v887 = vpop.f32.mrb[0].mxu0
  %888 = vdwg.mxu0
  %v889 = vmax.f32 %v886, 0.0
  %v890 = vld [vmem:[%s9] sm:$0xff]
  %v891 = vld [vmem:[%s9 + $0x8] sm:$0xff]
  %v892 = vld [vmem:[%s9 + $0x10] sm:$0xff]
  %v893 = vld [vmem:[%s9 + $0x18] sm:$0xff]
  %v894 = vld [vmem:[%s9 + $0x20] sm:$0xff]
  %v895 = vld [vmem:[%s9 + $0x28] sm:$0xff]
  %v896 = vld [vmem:[%s9 + $0x30] sm:$0xff]
  %v897 = vld [vmem:[%s9 + $0x38] sm:$0xff]
  %v898 = vld [vmem:[%s9 + $0x40] sm:$0xff]
  %v899 = vld [vmem:[%s9 + $0x48] sm:$0xff]
  %v900 = vld [vmem:[%s9 + $0x50] sm:$0xff]
  %v901 = vld [vmem:[%s9 + $0x58] sm:$0xff]
  %v902 = vld [vmem:[%s9 + $0x60] sm:$0xff]
  %v903 = vld [vmem:[%s9 + $0x68] sm:$0xff]
  %v904 = vld [vmem:[%s9 + $0x70] sm:$0xff]
  %v905 = vld [vmem:[%s9 + $0x78] sm:$0xff]
  %v906 = vld [vmem:[%s9 + $0x80] sm:$0xff]
  %v907 = vld [vmem:[%s9 + $0x88] sm:$0xff]
  %v908 = vld [vmem:[%s9 + $0x90] sm:$0xff]
  %v909 = vld [vmem:[%s9 + $0x98] sm:$0xff]
  %v910 = vld [vmem:[%s9 + $0xa0] sm:$0xff]
  %v911 = vld [vmem:[%s9 + $0xa8] sm:$0xff]
  %v912 = vld [vmem:[%s9 + $0xb0] sm:$0xff]
  %v913 = vld [vmem:[%s9 + $0xb8] sm:$0xff]
  %vm914 = vcmask 261120
  %v916 = vsel %vm914, %v673, 0
  %918 = vmatprep.subr.mxu0 %v899
  %919 = vmatpush1.msra.mxu0 %v898
  %920 = vmatprep.subr.mxu0 %v901
  %921 = vmatpush1.msra.mxu0 %v900
  %922 = vmatprep.subr.mxu0 %v903
  %923 = vmatpush1.msra.mxu0 %v902
  %924 = vmatprep.subr.mxu0 %v905
  %925 = vmatpush1.msra.mxu0 %v904
  %926 = vmatprep.subr.mxu0 0.0
  %927 = vmatpush1.msra.mxu0 0.0
  %928 = vmatprep.subr.mxu0 0.0
  %929 = vmatpush1.msra.mxu0 0.0
  %930 = vmatprep.subr.mxu0 0.0
  %931 = vmatpush1.msra.mxu0 0.0
  %932 = vmatprep.subr.mxu0 0.0
  %933 = vmatpush1.msra.mxu0 0.0
  %934 = vmatprep.subr.mxu0 0.0
  %935 = vmatpush1.msra.mxu0 0.0
  %936 = vmatprep.subr.mxu0 0.0
  %937 = vmatpush1.msra.mxu0 0.0
  %938 = vmatprep.subr.mxu0 0.0
  %939 = vmatpush1.msra.mxu0 0.0
  %940 = vmatprep.subr.mxu0 0.0
  %941 = vmatpush1.msra.mxu0 0.0
  %942 = vmatprep.subr.mxu0 0.0
  %943 = vmatpush1.msra.mxu0 0.0
  %944 = vmatprep.subr.mxu0 0.0
  %945 = vmatpush1.msra.mxu0 0.0
  %946 = vmatprep.subr.mxu0 0.0
  %947 = vmatpush1.msra.mxu0 0.0
  %948 = vmatprep.subr.mxu0 0.0
  %949 = vmatpush1.msra.mxu0 0.0
  %950 = vmatprep.subr.mxu0 0.0
  %951 = vmatpush1.msra.mxu0 0.0
  %952 = vmatprep.subr.mxu0 0.0
  %953 = vmatpush1.msra.mxu0 0.0
  %954 = vmatprep.subr.mxu0 0.0
  %955 = vmatpush1.msra.mxu0 0.0
  %956 = vmatprep.subr.mxu0 0.0
  %957 = vmatpush1.msra.mxu0 0.0
  %958 = vmatprep.subr.mxu0 0.0
  %959 = vmatpush1.msra.mxu0 0.0
  %960 = vmatprep.subr.mxu0 0.0
  %961 = vmatpush1.msra.mxu0 0.0
  %962 = vmatprep.subr.mxu0 0.0
  %963 = vmatpush1.msra.mxu0 0.0
  %964 = vmatprep.subr.mxu0 0.0
  %965 = vmatpush1.msra.mxu0 0.0
  %966 = vmatprep.subr.mxu0 0.0
  %967 = vmatpush1.msra.mxu0 0.0
  %968 = vmatprep.subr.mxu0 0.0
  %969 = vmatpush1.msra.mxu0 0.0
  %970 = vmatprep.subr.mxu0 0.0
  %971 = vmatpush1.msra.mxu0 0.0
  %972 = vmatprep.subr.mxu0 0.0
  %973 = vmatpush1.msra.mxu0 0.0
  %974 = vmatprep.subr.mxu0 0.0
  %975 = vmatpush1.msra.mxu0 0.0
  %976 = vmatprep.subr.mxu0 0.0
  %977 = vmatpush1.msra.mxu0 0.0
  %978 = vmatprep.subr.mxu0 0.0
  %979 = vmatpush1.msra.mxu0 0.0
  %980 = vmatprep.subr.mxu0 0.0
  %981 = vmatpush1.msra.mxu0 0.0
  %982 = vmatprep.mubr.f32.mxu0 0.0
  %983 = vmatmul.mubr.f32.gmra.mrb[0].mxu0 %v916
  %v984 = vpop.f32.mrb[0].mxu0
  %v985 = vadd.f32 0.0, %v984
  %v986 = vpop.f32.mrb[0].mxu0
  %v987 = vadd.f32 0.0, %v986
  %988 = vdwg.mxu0
  %v990 = vsel %vm914, %v449, 0
  %992 = vmatprep.subr.mxu0 %v891
  %993 = vmatpush1.msra.mxu0 %v890
  %994 = vmatprep.subr.mxu0 %v893
  %995 = vmatpush1.msra.mxu0 %v892
  %996 = vmatprep.subr.mxu0 %v895
  %997 = vmatpush1.msra.mxu0 %v894
  %998 = vmatprep.subr.mxu0 %v897
  %999 = vmatpush1.msra.mxu0 %v896
  %1000 = vmatprep.subr.mxu0 0.0
  %1001 = vmatpush1.msra.mxu0 0.0
  %1002 = vmatprep.subr.mxu0 0.0
  %1003 = vmatpush1.msra.mxu0 0.0
  %1004 = vmatprep.subr.mxu0 0.0
  %1005 = vmatpush1.msra.mxu0 0.0
  %1006 = vmatprep.subr.mxu0 0.0
  %1007 = vmatpush1.msra.mxu0 0.0
  %1008 = vmatprep.subr.mxu0 0.0
  %1009 = vmatpush1.msra.mxu0 0.0
  %1010 = vmatprep.subr.mxu0 0.0
  %1011 = vmatpush1.msra.mxu0 0.0
  %1012 = vmatprep.subr.mxu0 0.0
  %1013 = vmatpush1.msra.mxu0 0.0
  %1014 = vmatprep.subr.mxu0 0.0
  %1015 = vmatpush1.msra.mxu0 0.0
  %1016 = vmatprep.subr.mxu0 0.0
  %1017 = vmatpush1.msra.mxu0 0.0
  %1018 = vmatprep.subr.mxu0 0.0
  %1019 = vmatpush1.msra.mxu0 0.0
  %1020 = vmatprep.subr.mxu0 0.0
  %1021 = vmatpush1.msra.mxu0 0.0
  %1022 = vmatprep.subr.mxu0 0.0
  %1023 = vmatpush1.msra.mxu0 0.0
  %1024 = vmatprep.subr.mxu0 0.0
  %1025 = vmatpush1.msra.mxu0 0.0
  %1026 = vmatprep.subr.mxu0 0.0
  %1027 = vmatpush1.msra.mxu0 0.0
  %1028 = vmatprep.subr.mxu0 0.0
  %1029 = vmatpush1.msra.mxu0 0.0
  %1030 = vmatprep.subr.mxu0 0.0
  %1031 = vmatpush1.msra.mxu0 0.0
  %1032 = vmatprep.subr.mxu0 0.0
  %1033 = vmatpush1.msra.mxu0 0.0
  %1034 = vmatprep.subr.mxu0 0.0
  %1035 = vmatpush1.msra.mxu0 0.0
  %1036 = vmatprep.subr.mxu0 0.0
  %1037 = vmatpush1.msra.mxu0 0.0
  %1038 = vmatprep.subr.mxu0 0.0
  %1039 = vmatpush1.msra.mxu0 0.0
  %1040 = vmatprep.subr.mxu0 0.0
  %1041 = vmatpush1.msra.mxu0 0.0
  %1042 = vmatprep.subr.mxu0 0.0
  %1043 = vmatpush1.msra.mxu0 0.0
  %1044 = vmatprep.subr.mxu0 0.0
  %1045 = vmatpush1.msra.mxu0 0.0
  %1046 = vmatprep.subr.mxu0 0.0
  %1047 = vmatpush1.msra.mxu0 0.0
  %1048 = vmatprep.subr.mxu0 0.0
  %1049 = vmatpush1.msra.mxu0 0.0
  %1050 = vmatprep.subr.mxu0 0.0
  %1051 = vmatpush1.msra.mxu0 0.0
  %1052 = vmatprep.subr.mxu0 0.0
  %1053 = vmatpush1.msra.mxu0 0.0
  %1054 = vmatprep.subr.mxu0 0.0
  %1055 = vmatpush1.msra.mxu0 0.0
  %1056 = vmatprep.mubr.f32.mxu0 0.0
  %1057 = vmatmul.mubr.f32.gmra.mrb[0].mxu0 %v990
  %v1058 = vpop.f32.mrb[0].mxu0
  %v1059 = vadd.f32 %v985, %v1058
  %v1060 = vpop.f32.mrb[0].mxu0
  %v1061 = vadd.f32 %v987, %v1060
  %1062 = vdwg.mxu0
  %v1064 = vsel %vm914, %v889, 0
  %1066 = vmatprep.subr.mxu0 %v907
  %1067 = vmatpush1.msra.mxu0 %v906
  %1068 = vmatprep.subr.mxu0 %v909
  %1069 = vmatpush1.msra.mxu0 %v908
  %1070 = vmatprep.subr.mxu0 %v911
  %1071 = vmatpush1.msra.mxu0 %v910
  %1072 = vmatprep.subr.mxu0 %v913
  %1073 = vmatpush1.msra.mxu0 %v912
  %1074 = vmatprep.subr.mxu0 0.0
  %1075 = vmatpush1.msra.mxu0 0.0
  %1076 = vmatprep.subr.mxu0 0.0
  %1077 = vmatpush1.msra.mxu0 0.0
  %1078 = vmatprep.subr.mxu0 0.0
  %1079 = vmatpush1.msra.mxu0 0.0
  %1080 = vmatprep.subr.mxu0 0.0
  %1081 = vmatpush1.msra.mxu0 0.0
  %1082 = vmatprep.subr.mxu0 0.0
  %1083 = vmatpush1.msra.mxu0 0.0
  %1084 = vmatprep.subr.mxu0 0.0
  %1085 = vmatpush1.msra.mxu0 0.0
  %1086 = vmatprep.subr.mxu0 0.0
  %1087 = vmatpush1.msra.mxu0 0.0
  %1088 = vmatprep.subr.mxu0 0.0
  %1089 = vmatpush1.msra.mxu0 0.0
  %1090 = vmatprep.subr.mxu0 0.0
  %1091 = vmatpush1.msra.mxu0 0.0
  %1092 = vmatprep.subr.mxu0 0.0
  %1093 = vmatpush1.msra.mxu0 0.0
  %1094 = vmatprep.subr.mxu0 0.0
  %1095 = vmatpush1.msra.mxu0 0.0
  %1096 = vmatprep.subr.mxu0 0.0
  %1097 = vmatpush1.msra.mxu0 0.0
  %1098 = vmatprep.subr.mxu0 0.0
  %1099 = vmatpush1.msra.mxu0 0.0
  %1100 = vmatprep.subr.mxu0 0.0
  %1101 = vmatpush1.msra.mxu0 0.0
  %1102 = vmatprep.subr.mxu0 0.0
  %1103 = vmatpush1.msra.mxu0 0.0
  %1104 = vmatprep.subr.mxu0 0.0
  %1105 = vmatpush1.msra.mxu0 0.0
  %1106 = vmatprep.subr.mxu0 0.0
  %1107 = vmatpush1.msra.mxu0 0.0
  %1108 = vmatprep.subr.mxu0 0.0
  %1109 = vmatpush1.msra.mxu0 0.0
  %1110 = vmatprep.subr.mxu0 0.0
  %1111 = vmatpush1.msra.mxu0 0.0
  %1112 = vmatprep.subr.mxu0 0.0
  %1113 = vmatpush1.msra.mxu0 0.0
  %1114 = vmatprep.subr.mxu0 0.0
  %1115 = vmatpush1.msra.mxu0 0.0
  %1116 = vmatprep.subr.mxu0 0.0
  %1117 = vmatpush1.msra.mxu0 0.0
  %1118 = vmatprep.subr.mxu0 0.0
  %1119 = vmatpush1.msra.mxu0 0.0
  %1120 = vmatprep.subr.mxu0 0.0
  %1121 = vmatpush1.msra.mxu0 0.0
  %1122 = vmatprep.subr.mxu0 0.0
  %1123 = vmatpush1.msra.mxu0 0.0
  %1124 = vmatprep.subr.mxu0 0.0
  %1125 = vmatpush1.msra.mxu0 0.0
  %1126 = vmatprep.subr.mxu0 0.0
  %1127 = vmatpush1.msra.mxu0 0.0
  %1128 = vmatprep.subr.mxu0 0.0
  %1129 = vmatpush1.msra.mxu0 0.0
  %1130 = vmatprep.mubr.f32.mxu0 0.0
  %1131 = vmatmul.mubr.f32.gmra.mrb[0].mxu0 %v1064
  %v1132 = vpop.f32.mrb[0].mxu0
  %v1133 = vadd.f32 0.0, %v1132
  %v1134 = vpop.f32.mrb[0].mxu0
  %v1135 = vadd.f32 0.0, %v1134
  %1136 = vdwg.mxu0
  %v1137 = vadd.f32 %v1059, %v1133
  %v1138 = vadd.f32 %v1061, %v1135
  %v1139 = vld [vmem:[%s11 + $0xa] sm:$0x3]
  %v1141 = vlaneseq
  %v1142 = vshrl.u32 %v1141, 7
  %v1143 = vsub.s32 0, %v1142
  %v1144 = vrot.slane %v1139, %v1143
  %v1145 = vlaneseq
  %v1146 = vshrl.u32 %v1145, 7
  %v1147 = vsub.s32 1, %v1146
  %v1148 = vrot.slane %v1139, %v1147
  %v1151 = vadd.f32 %v1137, %v1144
  %v1152 = vadd.f32 %v1138, %v1148
  %v1153 = vmax.f32 %v1151, 0.0
  %v1154 = vmax.f32 %v1152, 0.0
  %v1155 = vld [vmem:[%s10] sm:$0xff]
  %v1156 = vld [vmem:[%s10 + $0x8] sm:$0xff]
  %v1157 = vld [vmem:[%s10 + $0x10] sm:$0xff]
  %v1158 = vld [vmem:[%s10 + $0x18] sm:$0xff]
  %v1159 = vld [vmem:[%s10 + $0x20] sm:$0xff]
  %v1160 = vld [vmem:[%s10 + $0x28] sm:$0xff]
  %v1161 = vld [vmem:[%s10 + $0x30] sm:$0xff]
  %v1162 = vld [vmem:[%s10 + $0x38] sm:$0xff]
  %v1163 = vld [vmem:[%s10 + $0x40] sm:$0xff]
  %v1164 = vld [vmem:[%s10 + $0x48] sm:$0xff]
  %v1165 = vld [vmem:[%s10 + $0x50] sm:$0xff]
  %v1166 = vld [vmem:[%s10 + $0x58] sm:$0xff]
  %v1167 = vld [vmem:[%s10 + $0x60] sm:$0xff]
  %v1168 = vld [vmem:[%s10 + $0x68] sm:$0xff]
  %v1169 = vld [vmem:[%s10 + $0x70] sm:$0xff]
  %v1170 = vld [vmem:[%s10 + $0x78] sm:$0xff]
  %v1171 = vld [vmem:[%s10 + $0x80] sm:$0xff]
  %v1172 = vld [vmem:[%s10 + $0x88] sm:$0xff]
  %v1173 = vld [vmem:[%s10 + $0x90] sm:$0xff]
  %v1174 = vld [vmem:[%s10 + $0x98] sm:$0xff]
  %v1175 = vld [vmem:[%s10 + $0xa0] sm:$0xff]
  %v1176 = vld [vmem:[%s10 + $0xa8] sm:$0xff]
  %v1177 = vld [vmem:[%s10 + $0xb0] sm:$0xff]
  %v1178 = vld [vmem:[%s10 + $0xb8] sm:$0xff]
  %v1179 = vld [vmem:[%s11 + $0xc] sm:$0x1]
  %v1181 = vlaneseq
  %v1182 = vshrl.u32 %v1181, 7
  %v1183 = vsub.s32 0, %v1182
  %v1184 = vrot.slane %v1179, %v1183
  %v1187 = vsel %vm703, %v1154, 0
  %1189 = vmatprep.subr.mxu0 0.0
  %1190 = vmatpush1.msra.mxu0 %v1155
  %1191 = vmatprep.subr.mxu0 0.0
  %1192 = vmatpush1.msra.mxu0 %v1156
  %1193 = vmatprep.subr.mxu0 0.0
  %1194 = vmatpush1.msra.mxu0 %v1157
  %1195 = vmatprep.subr.mxu0 0.0
  %1196 = vmatpush1.msra.mxu0 %v1158
  %1197 = vmatprep.subr.mxu0 0.0
  %1198 = vmatpush1.msra.mxu0 %v1159
  %1199 = vmatprep.subr.mxu0 0.0
  %1200 = vmatpush1.msra.mxu0 %v1160
  %1201 = vmatprep.subr.mxu0 0.0
  %1202 = vmatpush1.msra.mxu0 %v1161
  %1203 = vmatprep.subr.mxu0 0.0
  %1204 = vmatpush1.msra.mxu0 %v1162
  %1205 = vmatprep.subr.mxu0 0.0
  %1206 = vmatpush1.msra.mxu0 %v1163
  %1207 = vmatprep.subr.mxu0 0.0
  %1208 = vmatpush1.msra.mxu0 %v1164
  %1209 = vmatprep.subr.mxu0 0.0
  %1210 = vmatpush1.msra.mxu0 %v1165
  %1211 = vmatprep.subr.mxu0 0.0
  %1212 = vmatpush1.msra.mxu0 %v1166
  %1213 = vmatprep.subr.mxu0 0.0
  %1214 = vmatpush1.msra.mxu0 %v1167
  %1215 = vmatprep.subr.mxu0 0.0
  %1216 = vmatpush1.msra.mxu0 %v1168
  %1217 = vmatprep.subr.mxu0 0.0
  %1218 = vmatpush1.msra.mxu0 %v1169
  %1219 = vmatprep.subr.mxu0 0.0
  %1220 = vmatpush1.msra.mxu0 %v1170
  %1221 = vmatprep.subr.mxu0 0.0
  %1222 = vmatpush1.msra.mxu0 %v1171
  %1223 = vmatprep.subr.mxu0 0.0
  %1224 = vmatpush1.msra.mxu0 %v1172
  %1225 = vmatprep.subr.mxu0 0.0
  %1226 = vmatpush1.msra.mxu0 %v1173
  %1227 = vmatprep.subr.mxu0 0.0
  %1228 = vmatpush1.msra.mxu0 %v1174
  %1229 = vmatprep.subr.mxu0 0.0
  %1230 = vmatpush1.msra.mxu0 %v1175
  %1231 = vmatprep.subr.mxu0 0.0
  %1232 = vmatpush1.msra.mxu0 %v1176
  %1233 = vmatprep.subr.mxu0 0.0
  %1234 = vmatpush1.msra.mxu0 %v1177
  %1235 = vmatprep.subr.mxu0 0.0
  %1236 = vmatpush1.msra.mxu0 %v1178
  %1237 = vmatprep.subr.mxu0 0.0
  %1238 = vmatpush1.msra.mxu0 0.0
  %1239 = vmatprep.subr.mxu0 0.0
  %1240 = vmatpush1.msra.mxu0 0.0
  %1241 = vmatprep.subr.mxu0 0.0
  %1242 = vmatpush1.msra.mxu0 0.0
  %1243 = vmatprep.subr.mxu0 0.0
  %1244 = vmatpush1.msra.mxu0 0.0
  %1245 = vmatprep.subr.mxu0 0.0
  %1246 = vmatpush1.msra.mxu0 0.0
  %1247 = vmatprep.subr.mxu0 0.0
  %1248 = vmatpush1.msra.mxu0 0.0
  %1249 = vmatprep.subr.mxu0 0.0
  %1250 = vmatpush1.msra.mxu0 0.0
  %1251 = vmatprep.subr.mxu0 0.0
  %1252 = vmatpush1.msra.mxu0 0.0
  %1253 = vmatprep.mubr.f32.mxu0 %v1187
  %1254 = vmatmul.mubr.f32.gmra.mrb[0].mxu0 %v1153
  %v1255 = vpop.f32.mrb[0].mxu0
  %v1256 = vadd.f32 %v1184, %v1255
  %v1257 = vpop.f32.mrb[0].mxu0
  %1258 = vdwg.mxu0
  %v1259 = vmax.f32 %v1256, 0.0
  %v1260 = vld [vmem:[%s12] sm:$0xff]
  %v1261 = vld [vmem:[%s12 + $0x8] sm:$0xff]
  %v1262 = vld [vmem:[%s12 + $0x10] sm:$0xff]
  %v1263 = vld [vmem:[%s12 + $0x18] sm:$0xff]
  %v1264 = vld [vmem:[%s12 + $0x20] sm:$0xff]
  %v1265 = vld [vmem:[%s12 + $0x28] sm:$0xff]
  %v1266 = vld [vmem:[%s12 + $0x30] sm:$0xff]
  %v1267 = vld [vmem:[%s12 + $0x38] sm:$0xff]
  %v1268 = vld [vmem:[%s11 + $0xd] sm:$0x1]
  %v1270 = vlaneseq
  %v1271 = vshrl.u32 %v1270, 7
  %v1272 = vsub.s32 0, %v1271
  %v1273 = vrot.slane %v1268, %v1272
  %vm1275 = vcmask 392192
  %v1277 = vsel %vm1275, %v1259, 0
  %1279 = vmatprep.subr.mxu0 0.0
  %1280 = vmatpush1.msra.mxu0 %v1260
  %1281 = vmatprep.subr.mxu0 0.0
  %1282 = vmatpush1.msra.mxu0 %v1261
  %1283 = vmatprep.subr.mxu0 0.0
  %1284 = vmatpush1.msra.mxu0 %v1262
  %1285 = vmatprep.subr.mxu0 0.0
  %1286 = vmatpush1.msra.mxu0 %v1263
  %1287 = vmatprep.subr.mxu0 0.0
  %1288 = vmatpush1.msra.mxu0 %v1264
  %1289 = vmatprep.subr.mxu0 0.0
  %1290 = vmatpush1.msra.mxu0 %v1265
  %1291 = vmatprep.subr.mxu0 0.0
  %1292 = vmatpush1.msra.mxu0 0.0
  %1293 = vmatprep.subr.mxu0 0.0
  %1294 = vmatpush1.msra.mxu0 0.0
  %1295 = vmatprep.subr.mxu0 0.0
  %1296 = vmatpush1.msra.mxu0 0.0
  %1297 = vmatprep.subr.mxu0 0.0
  %1298 = vmatpush1.msra.mxu0 0.0
  %1299 = vmatprep.subr.mxu0 0.0
  %1300 = vmatpush1.msra.mxu0 0.0
  %1301 = vmatprep.subr.mxu0 0.0
  %1302 = vmatpush1.msra.mxu0 0.0
  %1303 = vmatprep.subr.mxu0 0.0
  %1304 = vmatpush1.msra.mxu0 0.0
  %1305 = vmatprep.subr.mxu0 0.0
  %1306 = vmatpush1.msra.mxu0 0.0
  %1307 = vmatprep.subr.mxu0 0.0
  %1308 = vmatpush1.msra.mxu0 0.0
  %1309 = vmatprep.subr.mxu0 0.0
  %1310 = vmatpush1.msra.mxu0 0.0
  %1311 = vmatprep.subr.mxu0 0.0
  %1312 = vmatpush1.msra.mxu0 0.0
  %1313 = vmatprep.subr.mxu0 0.0
  %1314 = vmatpush1.msra.mxu0 0.0
  %1315 = vmatprep.subr.mxu0 0.0
  %1316 = vmatpush1.msra.mxu0 0.0
  %1317 = vmatprep.subr.mxu0 0.0
  %1318 = vmatpush1.msra.mxu0 0.0
  %1319 = vmatprep.subr.mxu0 0.0
  %1320 = vmatpush1.msra.mxu0 0.0
  %1321 = vmatprep.subr.mxu0 0.0
  %1322 = vmatpush1.msra.mxu0 0.0
  %1323 = vmatprep.subr.mxu0 0.0
  %1324 = vmatpush1.msra.mxu0 0.0
  %1325 = vmatprep.subr.mxu0 0.0
  %1326 = vmatpush1.msra.mxu0 0.0
  %1327 = vmatprep.subr.mxu0 0.0
  %1328 = vmatpush1.msra.mxu0 0.0
  %1329 = vmatprep.subr.mxu0 0.0
  %1330 = vmatpush1.msra.mxu0 0.0
  %1331 = vmatprep.subr.mxu0 0.0
  %1332 = vmatpush1.msra.mxu0 0.0
  %1333 = vmatprep.subr.mxu0 0.0
  %1334 = vmatpush1.msra.mxu0 0.0
  %1335 = vmatprep.subr.mxu0 0.0
  %1336 = vmatpush1.msra.mxu0 0.0
  %1337 = vmatprep.subr.mxu0 0.0
  %1338 = vmatpush1.msra.mxu0 0.0
  %1339 = vmatprep.subr.mxu0 0.0
  %1340 = vmatpush1.msra.mxu0 0.0
  %1341 = vmatprep.subr.mxu0 0.0
  %1342 = vmatpush1.msra.mxu0 0.0
  %1343 = vmatprep.mubr.f32.mxu0 0.0
  %1344 = vmatmul.mubr.f32.gmra.mrb[0].mxu0 %v1277
  %v1345 = vpop.f32.mrb[0].mxu0
  %v1346 = vadd.f32 %v1273, %v1345
  %v1347 = vpop.f32.mrb[0].mxu0
  %1348 = vdwg.mxu0
  %v1349 = vmax.f32 %v1346, 0.0
  %v1350 = vld [vmem:[%s11 + $0xe] sm:$0x1]
  %v1352 = vlaneseq
  %v1353 = vshrl.u32 %v1352, 7
  %v1354 = vsub.s32 0, %v1353
  %v1355 = vrot.slane %v1350, %v1354
  %vm1357 = vcmask 130048
  %v1359 = vsel %vm1357, %v1349, 0
  %1361 = vmatprep.subr.mxu0 0.0
  %1362 = vmatpush1.msra.mxu0 %v1266
  %1363 = vmatprep.subr.mxu0 0.0
  %1364 = vmatpush1.msra.mxu0 %v1267
  %1365 = vmatprep.subr.mxu0 0.0
  %1366 = vmatpush1.msra.mxu0 0.0
  %1367 = vmatprep.subr.mxu0 0.0
  %1368 = vmatpush1.msra.mxu0 0.0
  %1369 = vmatprep.subr.mxu0 0.0
  %1370 = vmatpush1.msra.mxu0 0.0
  %1371 = vmatprep.subr.mxu0 0.0
  %1372 = vmatpush1.msra.mxu0 0.0
  %1373 = vmatprep.subr.mxu0 0.0
  %1374 = vmatpush1.msra.mxu0 0.0
  %1375 = vmatprep.subr.mxu0 0.0
  %1376 = vmatpush1.msra.mxu0 0.0
  %1377 = vmatprep.subr.mxu0 0.0
  %1378 = vmatpush1.msra.mxu0 0.0
  %1379 = vmatprep.subr.mxu0 0.0
  %1380 = vmatpush1.msra.mxu0 0.0
  %1381 = vmatprep.subr.mxu0 0.0
  %1382 = vmatpush1.msra.mxu0 0.0
  %1383 = vmatprep.subr.mxu0 0.0
  %1384 = vmatpush1.msra.mxu0 0.0
  %1385 = vmatprep.subr.mxu0 0.0
  %1386 = vmatpush1.msra.mxu0 0.0
  %1387 = vmatprep.subr.mxu0 0.0
  %1388 = vmatpush1.msra.mxu0 0.0
  %1389 = vmatprep.subr.mxu0 0.0
  %1390 = vmatpush1.msra.mxu0 0.0
  %1391 = vmatprep.subr.mxu0 0.0
  %1392 = vmatpush1.msra.mxu0 0.0
  %1393 = vmatprep.subr.mxu0 0.0
  %1394 = vmatpush1.msra.mxu0 0.0
  %1395 = vmatprep.subr.mxu0 0.0
  %1396 = vmatpush1.msra.mxu0 0.0
  %1397 = vmatprep.subr.mxu0 0.0
  %1398 = vmatpush1.msra.mxu0 0.0
  %1399 = vmatprep.subr.mxu0 0.0
  %1400 = vmatpush1.msra.mxu0 0.0
  %1401 = vmatprep.subr.mxu0 0.0
  %1402 = vmatpush1.msra.mxu0 0.0
  %1403 = vmatprep.subr.mxu0 0.0
  %1404 = vmatpush1.msra.mxu0 0.0
  %1405 = vmatprep.subr.mxu0 0.0
  %1406 = vmatpush1.msra.mxu0 0.0
  %1407 = vmatprep.subr.mxu0 0.0
  %1408 = vmatpush1.msra.mxu0 0.0
  %1409 = vmatprep.subr.mxu0 0.0
  %1410 = vmatpush1.msra.mxu0 0.0
  %1411 = vmatprep.subr.mxu0 0.0
  %1412 = vmatpush1.msra.mxu0 0.0
  %1413 = vmatprep.subr.mxu0 0.0
  %1414 = vmatpush1.msra.mxu0 0.0
  %1415 = vmatprep.subr.mxu0 0.0
  %1416 = vmatpush1.msra.mxu0 0.0
  %1417 = vmatprep.subr.mxu0 0.0
  %1418 = vmatpush1.msra.mxu0 0.0
  %1419 = vmatprep.subr.mxu0 0.0
  %1420 = vmatpush1.msra.mxu0 0.0
  %1421 = vmatprep.subr.mxu0 0.0
  %1422 = vmatpush1.msra.mxu0 0.0
  %1423 = vmatprep.subr.mxu0 0.0
  %1424 = vmatpush1.msra.mxu0 0.0
  %1425 = vmatprep.mubr.f32.mxu0 0.0
  %1426 = vmatmul.mubr.f32.gmra.mrb[0].mxu0 %v1359
  %v1427 = vpop.f32.mrb[0].mxu0
  %v1428 = vadd.f32 %v1355, %v1427
  %v1429 = vpop.f32.mrb[0].mxu0
  %1430 = vdwg.mxu0
  %vm1431 = vcmask 23552
  %1432 = vst.msk [vmem:[%s13] sm:$0xff] %vm1431, %v1428
  // Predicated region
  $region54: #{tpu_custom_call.1} parent=0 // pred_check
    _
  $region55: #{tpu_custom_call.1} parent=0 // pred_check_branch
    %1434 = sbr.rel (0) target = $region57
  $region56: #{tpu_custom_call.1} parent=0 // pred_region
    _
  $region57: #{tpu_custom_call.1} parent=0 // pred_fallthru
    _
  // Predicated region
  $region58: #{tpu_custom_call.1} parent=0 // pred_check
    _
  $region59: #{tpu_custom_call.1} parent=0 // pred_check_branch
    %1436 = sbr.rel (0) target = $region61
  $region60: #{tpu_custom_call.1} parent=0 // pred_region
    _
  $region61: #{tpu_custom_call.1} parent=0 // pred_fallthru
    _

</llo_original>
